<compile_context>
chip_gen: v7x
topology: tpu7x:2x2x1
jax: 0.10.0
libtpu: 0.0.40
codegen_flags: <defaults>
</compile_context>

<pallas_src>
import jax
import jax.numpy as jnp
import numpy as np
from jax import lax
from jax.experimental import pallas as pl
from jax.experimental.pallas import tpu as pltpu


def _dw_sep_kernel(x_body_ref, x_top_ref, x_bot_ref,
                   wd_ref, bd_ref, wp_ref, bp_ref,
                   o_ref, slab_ref):
    """Fused depthwise 3x3 (pad=1) + bias + pointwise 1x1 + bias.

    Per grid step (n, r):
      x_body_ref : (1, TH, W, Cin)  rows [r*TH, r*TH+TH) of image n
      x_top_ref  : (1, 1,  W, Cin)  row max(r*TH-1, 0)      (halo above, clamped)
      x_bot_ref  : (1, 1,  W, Cin)  row min(r*TH+TH, H-1)   (halo below, clamped)
      wd_ref     : (9, Cin)         depthwise taps, tap-major (kh*3+kw)
      bd_ref     : (1, Cin)         depthwise bias
      wp_ref     : (Cin, Cout)      pointwise weight
      bp_ref     : (1, Cout)        pointwise bias
      o_ref      : (1, TH, W, Cout) output tile
      slab_ref   : (TH+2, W+2, Cin) f32 VMEM scratch (zero-padded working slab)
    """
    _, TH, W, Cin = x_body_ref.shape
    Cout = o_ref.shape[-1]

    r = pl.program_id(1)
    n_r = pl.num_programs(1)

    # ---- assemble the zero-padded (TH+2, W+2, Cin) slab in VMEM scratch ----
    # Halo rows that fall outside the image are zeroed via a scalar mask.
    top = x_top_ref[0].astype(jnp.float32) * (r > 0).astype(jnp.float32)
    bot = x_bot_ref[0].astype(jnp.float32) * (r < n_r - 1).astype(jnp.float32)

    slab_ref[pl.ds(0, 1), pl.ds(1, W), :] = top
    slab_ref[pl.ds(1, TH), pl.ds(1, W), :] = x_body_ref[0].astype(jnp.float32)
    slab_ref[pl.ds(TH + 1, 1), pl.ds(1, W), :] = bot
    zcol = jnp.zeros((TH + 2, 1, Cin), jnp.float32)
    slab_ref[:, pl.ds(0, 1), :] = zcol
    slab_ref[:, pl.ds(W + 1, 1), :] = zcol

    # ---- depthwise 3x3: 9 VPU multiply-adds with broadcast channel weights ----
    acc = jnp.zeros((TH, W, Cin), jnp.float32)
    for kh in range(3):
        for kw in range(3):
            tap = slab_ref[pl.ds(kh, TH), pl.ds(kw, W), :]      # (TH, W, Cin)
            wk = wd_ref[pl.ds(kh * 3 + kw, 1), :]                # (1, Cin)
            acc = acc + tap * wk
    acc = acc + bd_ref[...]                                      # depthwise bias

    # ---- pointwise 1x1: one MXU matmul over the whole row tile ----
    y = jnp.dot(acc.reshape(TH * W, Cin), wp_ref[...],
                preferred_element_type=jnp.float32)
    y = y + bp_ref[...]                                          # pointwise bias
    o_ref[...] = y.reshape(1, TH, W, Cout).astype(o_ref.dtype)


def _pick_tile_h(H, W, Cin, Cout, vmem_budget_bytes=4 * 1024 * 1024):
    """Largest row tile dividing H whose working set fits a conservative budget
    (slab scratch + double-buffered input/halo/output blocks, all f32)."""
    best = 1
    for th in range(1, H + 1):
        if H % th:
            continue
        need = 4 * (
            (th + 2) * (W + 2) * Cin            # slab scratch
            + 2 * (th * W * Cin + 2 * W * Cin)  # double-buffered input + halos
            + 2 * th * W * Cout                 # double-buffered output
        )
        if need <= vmem_budget_bytes:
            best = th
    return best


def depthwise_separable_conv(x_nchw, dw_weight, dw_bias, pw_weight, pw_bias,
                             *, tile_h=None):
    """Forward pass of the PyTorch DepthwiseSeparableConv module.

    x_nchw    : (N, Cin, H, W)
    dw_weight : (Cin, 1, 3, 3)   (PyTorch depthwise conv weight, groups=Cin)
    dw_bias   : (Cin,)
    pw_weight : (Cout, Cin, 1, 1)
    pw_bias   : (Cout,)
    returns   : (N, Cout, H, W)
    """
    N, Cin, H, W = x_nchw.shape
    Cout = pw_weight.shape[0]

    if tile_h is None:
        tile_h = _pick_tile_h(H, W, Cin, Cout)
    if H % tile_h != 0:
        raise ValueError(f"tile_h={tile_h} must divide H={H}")
    TH = tile_h
    n_r = H // TH

    # --- weight layout plumbing (tiny tensors, negligible cost) ---
    wd = jnp.transpose(dw_weight.reshape(Cin, 9), (1, 0)).astype(jnp.float32)   # (9, Cin)
    bd = dw_bias.reshape(1, Cin).astype(jnp.float32)
    wp = jnp.transpose(pw_weight.reshape(Cout, Cin), (1, 0)).astype(jnp.float32)  # (Cin, Cout)
    bp = pw_bias.reshape(1, Cout).astype(jnp.float32)

    # NCHW -> NHWC (channels on lanes). Boundary-only for PyTorch interop.
    x = jnp.transpose(x_nchw, (0, 2, 3, 1))

    body_spec = pl.BlockSpec((1, TH, W, Cin), lambda n, r: (n, r, 0, 0))
    top_spec = pl.BlockSpec(
        (1, 1, W, Cin), lambda n, r: (n, jnp.maximum(r * TH - 1, 0), 0, 0))
    bot_spec = pl.BlockSpec(
        (1, 1, W, Cin), lambda n, r: (n, jnp.minimum((r + 1) * TH, H - 1), 0, 0))

    out_nhwc = pl.pallas_call(
        _dw_sep_kernel,
        out_shape=jax.ShapeDtypeStruct((N, H, W, Cout), x.dtype),
        grid=(N, n_r),
        in_specs=[
            body_spec, top_spec, bot_spec,
            pl.BlockSpec((9, Cin), lambda n, r: (0, 0)),
            pl.BlockSpec((1, Cin), lambda n, r: (0, 0)),
            pl.BlockSpec((Cin, Cout), lambda n, r: (0, 0)),
            pl.BlockSpec((1, Cout), lambda n, r: (0, 0)),
        ],
        out_specs=pl.BlockSpec((1, TH, W, Cout), lambda n, r: (n, r, 0, 0)),
        scratch_shapes=[pltpu.VMEM((TH + 2, W + 2, Cin), jnp.float32)],
        compiler_params=pltpu.CompilerParams(
            dimension_semantics=("parallel", "parallel")),
    )(x, x, x, wd, bd, wp, bp)

    return jnp.transpose(out_nhwc, (0, 3, 1, 2))   # NHWC -> NCHW


# ----------------------- pure-JAX reference for validation -----------------------
def _ref_depthwise_separable(x_nchw, dw_weight, dw_bias, pw_weight, pw_bias):
    cin = x_nchw.shape[1]
    y = lax.conv_general_dilated(
        x_nchw, dw_weight, window_strides=(1, 1), padding=((1, 1), (1, 1)),
        dimension_numbers=("NCHW", "OIHW", "NCHW"),
        feature_group_count=cin)
    y = y + dw_bias.reshape(1, -1, 1, 1)
    z = lax.conv_general_dilated(
        y, pw_weight, window_strides=(1, 1), padding="VALID",
        dimension_numbers=("NCHW", "OIHW", "NCHW"))
    return z + pw_bias.reshape(1, -1, 1, 1)


if __name__ == "__main__":
    # Small deterministic example consistent with DepthwiseSeparableConv(3 -> 8).
    N, Cin, Cout, H, W = 2, 3, 8, 16, 16
    key = jax.random.PRNGKey(0)
    kx, kdw, kdb, kpw, kpb = jax.random.split(key, 5)

    x = jax.random.normal(kx, (N, Cin, H, W), dtype=jnp.float32)          # NCHW
    dw_w = jax.random.normal(kdw, (Cin, 1, 3, 3), dtype=jnp.float32) * 0.2
    dw_b = jax.random.normal(kdb, (Cin,), dtype=jnp.float32) * 0.1
    pw_w = jax.random.normal(kpw, (Cout, Cin, 1, 1), dtype=jnp.float32) * 0.2
    pw_b = jax.random.normal(kpb, (Cout,), dtype=jnp.float32) * 0.1

    # tile_h=8 -> grid (N=2, row_tiles=2): exercises halo clamping on both edges.
    out = depthwise_separable_conv(x, dw_w, dw_b, pw_w, pw_b, tile_h=8)
    out = jax.block_until_ready(out)

    ref = _ref_depthwise_separable(x, dw_w, dw_b, pw_w, pw_b)
    np.testing.assert_allclose(np.asarray(out), np.asarray(ref),
                               rtol=1e-4, atol=1e-4)
    print("KERNEL_OK")
</pallas_src>

<mosaic_0001>
module attributes {stable_mosaic.version = 11 : i64} {
  func.func @_dw_sep_kernel(%arg0: i32, %arg1: i32, %arg2: memref<1x8x16x3xf32, #tpu.memory_space<vmem>>, %arg3: memref<1x1x16x3xf32, #tpu.memory_space<vmem>>, %arg4: memref<1x1x16x3xf32, #tpu.memory_space<vmem>>, %arg5: memref<9x3xf32, #tpu.memory_space<vmem>>, %arg6: memref<1x3xf32, #tpu.memory_space<vmem>>, %arg7: memref<3x8xf32, #tpu.memory_space<vmem>>, %arg8: memref<1x8xf32, #tpu.memory_space<vmem>>, %arg9: memref<1x8x16x8xf32, #tpu.memory_space<vmem>>, %arg10: memref<10x18x3xf32, #tpu.memory_space<vmem>>) attributes {dimension_semantics = [#tpu.dimension_semantics<parallel>, #tpu.dimension_semantics<parallel>], iteration_bounds = array<i64: 2, 2>, scalar_prefetch = 0 : i64, scratch_operands = 1 : i64, tpu.core_type = #tpu.core_type<tc>, window_params = [{transform_indices = @transform_0, window_bounds = array<i64: 1, 8, 16, 3>}, {transform_indices = @transform_1, window_bounds = array<i64: 1, 1, 16, 3>}, {transform_indices = @transform_2, window_bounds = array<i64: 1, 1, 16, 3>}, {pipeline_mode = #tpu.pipeline_mode<synchronous>, transform_indices = @transform_3, window_bounds = array<i64: 9, 3>}, {pipeline_mode = #tpu.pipeline_mode<synchronous>, transform_indices = @transform_4, window_bounds = array<i64: 1, 3>}, {pipeline_mode = #tpu.pipeline_mode<synchronous>, transform_indices = @transform_5, window_bounds = array<i64: 3, 8>}, {pipeline_mode = #tpu.pipeline_mode<synchronous>, transform_indices = @transform_6, window_bounds = array<i64: 1, 8>}, {transform_indices = @transform_7, window_bounds = array<i64: 1, 8, 16, 8>}]} {
    %c0 = arith.constant 0 : index
    %c0_0 = arith.constant 0 : index
    %c0_1 = arith.constant 0 : index
    %c0_2 = arith.constant 0 : index
    %0 = vector.load %arg3[%c0, %c0_0, %c0_1, %c0_2] : memref<1x1x16x3xf32, #tpu.memory_space<vmem>>, vector<1x1x16x3xf32>
    %1 = vector.shape_cast %0 : vector<1x1x16x3xf32> to vector<1x16x3xf32>
    %c0_i32 = arith.constant 0 : i32
    %2 = arith.cmpi sgt, %arg1, %c0_i32 : i32
    %3 = arith.extui %2 : i1 to i32
    %4 = arith.sitofp %3 : i32 to f32
    %5 = vector.broadcast %4 : f32 to vector<1x16x3xf32>
    %6 = arith.mulf %1, %5 : vector<1x16x3xf32>
    %c0_3 = arith.constant 0 : index
    %c0_4 = arith.constant 0 : index
    %c0_5 = arith.constant 0 : index
    %c0_6 = arith.constant 0 : index
    %7 = vector.load %arg4[%c0_3, %c0_4, %c0_5, %c0_6] : memref<1x1x16x3xf32, #tpu.memory_space<vmem>>, vector<1x1x16x3xf32>
    %8 = vector.shape_cast %7 : vector<1x1x16x3xf32> to vector<1x16x3xf32>
    %c1_i32 = arith.constant 1 : i32
    %9 = arith.cmpi slt, %arg1, %c1_i32 : i32
    %10 = arith.extui %9 : i1 to i32
    %11 = arith.sitofp %10 : i32 to f32
    %12 = vector.broadcast %11 : f32 to vector<1x16x3xf32>
    %13 = arith.mulf %8, %12 : vector<1x16x3xf32>
    %c0_7 = arith.constant 0 : index
    %c1 = arith.constant 1 : index
    %c0_8 = arith.constant 0 : index
    %14 = vector.load %arg10[%c0_7, %c1, %c0_8] : memref<10x18x3xf32, #tpu.memory_space<vmem>>, vector<1x16x3xf32>
    tpu.vector_store %arg10[%c0_7, %c1, %c0_8], %6 {strides = array<i32>} : memref<10x18x3xf32, #tpu.memory_space<vmem>>, vector<1x16x3xf32>,
    %c0_9 = arith.constant 0 : index
    %c0_10 = arith.constant 0 : index
    %c0_11 = arith.constant 0 : index
    %c0_12 = arith.constant 0 : index
    %15 = vector.load %arg2[%c0_9, %c0_10, %c0_11, %c0_12] : memref<1x8x16x3xf32, #tpu.memory_space<vmem>>, vector<1x8x16x3xf32>
    %16 = vector.shape_cast %15 : vector<1x8x16x3xf32> to vector<8x16x3xf32>
    %c1_13 = arith.constant 1 : index
    %c1_14 = arith.constant 1 : index
    %c0_15 = arith.constant 0 : index
    %17 = vector.load %arg10[%c1_13, %c1_14, %c0_15] : memref<10x18x3xf32, #tpu.memory_space<vmem>>, vector<8x16x3xf32>
    tpu.vector_store %arg10[%c1_13, %c1_14, %c0_15], %16 {strides = array<i32>} : memref<10x18x3xf32, #tpu.memory_space<vmem>>, vector<8x16x3xf32>,
    %c9 = arith.constant 9 : index
    %c1_16 = arith.constant 1 : index
    %c0_17 = arith.constant 0 : index
    %18 = vector.load %arg10[%c9, %c1_16, %c0_17] : memref<10x18x3xf32, #tpu.memory_space<vmem>>, vector<1x16x3xf32>
    tpu.vector_store %arg10[%c9, %c1_16, %c0_17], %13 {strides = array<i32>} : memref<10x18x3xf32, #tpu.memory_space<vmem>>, vector<1x16x3xf32>,
    %cst = arith.constant 0.000000e+00 : f32
    %19 = vector.broadcast %cst : f32 to vector<10x1x3xf32>
    %c0_18 = arith.constant 0 : index
    %c0_19 = arith.constant 0 : index
    %c0_20 = arith.constant 0 : index
    %20 = vector.load %arg10[%c0_18, %c0_19, %c0_20] : memref<10x18x3xf32, #tpu.memory_space<vmem>>, vector<10x1x3xf32>
    tpu.vector_store %arg10[%c0_18, %c0_19, %c0_20], %19 {strides = array<i32>} : memref<10x18x3xf32, #tpu.memory_space<vmem>>, vector<10x1x3xf32>,
    %c0_21 = arith.constant 0 : index
    %c17 = arith.constant 17 : index
    %c0_22 = arith.constant 0 : index
    %21 = vector.load %arg10[%c0_21, %c17, %c0_22] : memref<10x18x3xf32, #tpu.memory_space<vmem>>, vector<10x1x3xf32>
    tpu.vector_store %arg10[%c0_21, %c17, %c0_22], %19 {strides = array<i32>} : memref<10x18x3xf32, #tpu.memory_space<vmem>>, vector<10x1x3xf32>,
    %cst_23 = arith.constant 0.000000e+00 : f32
    %22 = vector.broadcast %cst_23 : f32 to vector<8x16x3xf32>
    %c0_24 = arith.constant 0 : index
    %c0_25 = arith.constant 0 : index
    %c0_26 = arith.constant 0 : index
    %23 = vector.load %arg10[%c0_24, %c0_25, %c0_26] : memref<10x18x3xf32, #tpu.memory_space<vmem>>, vector<8x16x3xf32>
    %c0_27 = arith.constant 0 : index
    %c0_28 = arith.constant 0 : index
    %24 = vector.load %arg5[%c0_27, %c0_28] : memref<9x3xf32, #tpu.memory_space<vmem>>, vector<1x3xf32>
    %25 = vector.shape_cast %24 : vector<1x3xf32> to vector<1x1x3xf32>
    %26 = vector.broadcast %25 : vector<1x1x3xf32> to vector<8x16x3xf32>
    %27 = arith.mulf %23, %26 : vector<8x16x3xf32>
    %28 = arith.addf %22, %27 : vector<8x16x3xf32>
    %c0_29 = arith.constant 0 : index
    %c1_30 = arith.constant 1 : index
    %c0_31 = arith.constant 0 : index
    %29 = vector.load %arg10[%c0_29, %c1_30, %c0_31] : memref<10x18x3xf32, #tpu.memory_space<vmem>>, vector<8x16x3xf32>
    %c1_32 = arith.constant 1 : index
    %c0_33 = arith.constant 0 : index
    %30 = vector.load %arg5[%c1_32, %c0_33] : memref<9x3xf32, #tpu.memory_space<vmem>>, vector<1x3xf32>
    %31 = vector.shape_cast %30 : vector<1x3xf32> to vector<1x1x3xf32>
    %32 = vector.broadcast %31 : vector<1x1x3xf32> to vector<8x16x3xf32>
    %33 = arith.mulf %29, %32 : vector<8x16x3xf32>
    %34 = arith.addf %28, %33 : vector<8x16x3xf32>
    %c0_34 = arith.constant 0 : index
    %c2 = arith.constant 2 : index
    %c0_35 = arith.constant 0 : index
    %35 = vector.load %arg10[%c0_34, %c2, %c0_35] : memref<10x18x3xf32, #tpu.memory_space<vmem>>, vector<8x16x3xf32>
    %c2_36 = arith.constant 2 : index
    %c0_37 = arith.constant 0 : index
    %36 = vector.load %arg5[%c2_36, %c0_37] : memref<9x3xf32, #tpu.memory_space<vmem>>, vector<1x3xf32>
    %37 = vector.shape_cast %36 : vector<1x3xf32> to vector<1x1x3xf32>
    %38 = vector.broadcast %37 : vector<1x1x3xf32> to vector<8x16x3xf32>
    %39 = arith.mulf %35, %38 : vector<8x16x3xf32>
    %40 = arith.addf %34, %39 : vector<8x16x3xf32>
    %c1_38 = arith.constant 1 : index
    %c0_39 = arith.constant 0 : index
    %c0_40 = arith.constant 0 : index
    %41 = vector.load %arg10[%c1_38, %c0_39, %c0_40] : memref<10x18x3xf32, #tpu.memory_space<vmem>>, vector<8x16x3xf32>
    %c3 = arith.constant 3 : index
    %c0_41 = arith.constant 0 : index
    %42 = vector.load %arg5[%c3, %c0_41] : memref<9x3xf32, #tpu.memory_space<vmem>>, vector<1x3xf32>
    %43 = vector.shape_cast %42 : vector<1x3xf32> to vector<1x1x3xf32>
    %44 = vector.broadcast %43 : vector<1x1x3xf32> to vector<8x16x3xf32>
    %45 = arith.mulf %41, %44 : vector<8x16x3xf32>
    %46 = arith.addf %40, %45 : vector<8x16x3xf32>
    %c1_42 = arith.constant 1 : index
    %c1_43 = arith.constant 1 : index
    %c0_44 = arith.constant 0 : index
    %47 = vector.load %arg10[%c1_42, %c1_43, %c0_44] : memref<10x18x3xf32, #tpu.memory_space<vmem>>, vector<8x16x3xf32>
    %c4 = arith.constant 4 : index
    %c0_45 = arith.constant 0 : index
    %48 = vector.load %arg5[%c4, %c0_45] : memref<9x3xf32, #tpu.memory_space<vmem>>, vector<1x3xf32>
    %49 = vector.shape_cast %48 : vector<1x3xf32> to vector<1x1x3xf32>
    %50 = vector.broadcast %49 : vector<1x1x3xf32> to vector<8x16x3xf32>
    %51 = arith.mulf %47, %50 : vector<8x16x3xf32>
    %52 = arith.addf %46, %51 : vector<8x16x3xf32>
    %c1_46 = arith.constant 1 : index
    %c2_47 = arith.constant 2 : index
    %c0_48 = arith.constant 0 : index
    %53 = vector.load %arg10[%c1_46, %c2_47, %c0_48] : memref<10x18x3xf32, #tpu.memory_space<vmem>>, vector<8x16x3xf32>
    %c5 = arith.constant 5 : index
    %c0_49 = arith.constant 0 : index
    %54 = vector.load %arg5[%c5, %c0_49] : memref<9x3xf32, #tpu.memory_space<vmem>>, vector<1x3xf32>
    %55 = vector.shape_cast %54 : vector<1x3xf32> to vector<1x1x3xf32>
    %56 = vector.broadcast %55 : vector<1x1x3xf32> to vector<8x16x3xf32>
    %57 = arith.mulf %53, %56 : vector<8x16x3xf32>
    %58 = arith.addf %52, %57 : vector<8x16x3xf32>
    %c2_50 = arith.constant 2 : index
    %c0_51 = arith.constant 0 : index
    %c0_52 = arith.constant 0 : index
    %59 = vector.load %arg10[%c2_50, %c0_51, %c0_52] : memref<10x18x3xf32, #tpu.memory_space<vmem>>, vector<8x16x3xf32>
    %c6 = arith.constant 6 : index
    %c0_53 = arith.constant 0 : index
    %60 = vector.load %arg5[%c6, %c0_53] : memref<9x3xf32, #tpu.memory_space<vmem>>, vector<1x3xf32>
    %61 = vector.shape_cast %60 : vector<1x3xf32> to vector<1x1x3xf32>
    %62 = vector.broadcast %61 : vector<1x1x3xf32> to vector<8x16x3xf32>
    %63 = arith.mulf %59, %62 : vector<8x16x3xf32>
    %64 = arith.addf %58, %63 : vector<8x16x3xf32>
    %c2_54 = arith.constant 2 : index
    %c1_55 = arith.constant 1 : index
    %c0_56 = arith.constant 0 : index
    %65 = vector.load %arg10[%c2_54, %c1_55, %c0_56] : memref<10x18x3xf32, #tpu.memory_space<vmem>>, vector<8x16x3xf32>
    %c7 = arith.constant 7 : index
    %c0_57 = arith.constant 0 : index
    %66 = vector.load %arg5[%c7, %c0_57] : memref<9x3xf32, #tpu.memory_space<vmem>>, vector<1x3xf32>
    %67 = vector.shape_cast %66 : vector<1x3xf32> to vector<1x1x3xf32>
    %68 = vector.broadcast %67 : vector<1x1x3xf32> to vector<8x16x3xf32>
    %69 = arith.mulf %65, %68 : vector<8x16x3xf32>
    %70 = arith.addf %64, %69 : vector<8x16x3xf32>
    %c2_58 = arith.constant 2 : index
    %c2_59 = arith.constant 2 : index
    %c0_60 = arith.constant 0 : index
    %71 = vector.load %arg10[%c2_58, %c2_59, %c0_60] : memref<10x18x3xf32, #tpu.memory_space<vmem>>, vector<8x16x3xf32>
    %c8 = arith.constant 8 : index
    %c0_61 = arith.constant 0 : index
    %72 = vector.load %arg5[%c8, %c0_61] : memref<9x3xf32, #tpu.memory_space<vmem>>, vector<1x3xf32>
    %73 = vector.shape_cast %72 : vector<1x3xf32> to vector<1x1x3xf32>
    %74 = vector.broadcast %73 : vector<1x1x3xf32> to vector<8x16x3xf32>
    %75 = arith.mulf %71, %74 : vector<8x16x3xf32>
    %76 = arith.addf %70, %75 : vector<8x16x3xf32>
    %c0_62 = arith.constant 0 : index
    %c0_63 = arith.constant 0 : index
    %77 = vector.load %arg6[%c0_62, %c0_63] : memref<1x3xf32, #tpu.memory_space<vmem>>, vector<1x3xf32>
    %78 = vector.shape_cast %77 : vector<1x3xf32> to vector<1x1x3xf32>
    %79 = vector.broadcast %78 : vector<1x1x3xf32> to vector<8x16x3xf32>
    %80 = arith.addf %76, %79 : vector<8x16x3xf32>
    %81 = vector.shape_cast %80 : vector<8x16x3xf32> to vector<128x3xf32>
    %c0_64 = arith.constant 0 : index
    %c0_65 = arith.constant 0 : index
    %82 = vector.load %arg7[%c0_64, %c0_65] : memref<3x8xf32, #tpu.memory_space<vmem>>, vector<3x8xf32>
    %cst_66 = arith.constant dense<0.000000e+00> : vector<128x8xf32>
    %83 = tpu.matmul %81, %82, %cst_66 {dimension_numbers = #tpu.dot_dimension_numbers<[1], [0], [0], [1], [0, 0, 1, 1], [], []>} : vector<128x3xf32>, vector<3x8xf32>, vector<128x8xf32> -> vector<128x8xf32>
    %c0_67 = arith.constant 0 : index
    %c0_68 = arith.constant 0 : index
    %84 = vector.load %arg8[%c0_67, %c0_68] : memref<1x8xf32, #tpu.memory_space<vmem>>, vector<1x8xf32>
    %85 = vector.broadcast %84 : vector<1x8xf32> to vector<128x8xf32>
    %86 = arith.addf %83, %85 : vector<128x8xf32>
    %87 = vector.shape_cast %86 : vector<128x8xf32> to vector<1x8x16x8xf32>
    %c0_69 = arith.constant 0 : index
    %c0_70 = arith.constant 0 : index
    %c0_71 = arith.constant 0 : index
    %c0_72 = arith.constant 0 : index
    %88 = vector.load %arg9[%c0_69, %c0_70, %c0_71, %c0_72] : memref<1x8x16x8xf32, #tpu.memory_space<vmem>>, vector<1x8x16x8xf32>
    tpu.vector_store %arg9[%c0_69, %c0_70, %c0_71, %c0_72], %87 {strides = array<i32>} : memref<1x8x16x8xf32, #tpu.memory_space<vmem>>, vector<1x8x16x8xf32>,
    return
  }
  func.func @transform_0(%arg0: i32, %arg1: i32) -> (i32, i32, i32, i32) {
    %c0_i32 = arith.constant 0 : i32
    %c0_i32_0 = arith.constant 0 : i32
    %c0_i32_1 = arith.constant 0 : i32
    return %arg0, %arg1, %c0_i32, %c0_i32_0 : i32, i32, i32, i32
  }
  func.func @transform_1(%arg0: i32, %arg1: i32) -> (i32, i32, i32, i32) {
    %c8_i32 = arith.constant 8 : i32
    %0 = arith.muli %arg1, %c8_i32 : i32
    %c1_i32 = arith.constant 1 : i32
    %1 = arith.subi %0, %c1_i32 : i32
    %c0_i32 = arith.constant 0 : i32
    %2 = arith.maxsi %1, %c0_i32 : i32
    %c0_i32_0 = arith.constant 0 : i32
    %c0_i32_1 = arith.constant 0 : i32
    %c0_i32_2 = arith.constant 0 : i32
    return %arg0, %2, %c0_i32_0, %c0_i32_1 : i32, i32, i32, i32
  }
  func.func @transform_2(%arg0: i32, %arg1: i32) -> (i32, i32, i32, i32) {
    %c1_i32 = arith.constant 1 : i32
    %0 = arith.addi %arg1, %c1_i32 : i32
    %c8_i32 = arith.constant 8 : i32
    %1 = arith.muli %0, %c8_i32 : i32
    %c15_i32 = arith.constant 15 : i32
    %2 = arith.minsi %1, %c15_i32 : i32
    %c0_i32 = arith.constant 0 : i32
    %c0_i32_0 = arith.constant 0 : i32
    %c0_i32_1 = arith.constant 0 : i32
    return %arg0, %2, %c0_i32, %c0_i32_0 : i32, i32, i32, i32
  }
  func.func @transform_3(%arg0: i32, %arg1: i32) -> (i32, i32) {
    %c0_i32 = arith.constant 0 : i32
    %c0_i32_0 = arith.constant 0 : i32
    %c0_i32_1 = arith.constant 0 : i32
    return %c0_i32, %c0_i32_0 : i32, i32
  }
  func.func @transform_4(%arg0: i32, %arg1: i32) -> (i32, i32) {
    %c0_i32 = arith.constant 0 : i32
    %c0_i32_0 = arith.constant 0 : i32
    %c0_i32_1 = arith.constant 0 : i32
    return %c0_i32, %c0_i32_0 : i32, i32
  }
  func.func @transform_5(%arg0: i32, %arg1: i32) -> (i32, i32) {
    %c0_i32 = arith.constant 0 : i32
    %c0_i32_0 = arith.constant 0 : i32
    %c0_i32_1 = arith.constant 0 : i32
    return %c0_i32, %c0_i32_0 : i32, i32
  }
  func.func @transform_6(%arg0: i32, %arg1: i32) -> (i32, i32) {
    %c0_i32 = arith.constant 0 : i32
    %c0_i32_0 = arith.constant 0 : i32
    %c0_i32_1 = arith.constant 0 : i32
    return %c0_i32, %c0_i32_0 : i32, i32
  }
  func.func @transform_7(%arg0: i32, %arg1: i32) -> (i32, i32, i32, i32) {
    %c0_i32 = arith.constant 0 : i32
    %c0_i32_0 = arith.constant 0 : i32
    %c0_i32_1 = arith.constant 0 : i32
    return %arg0, %arg1, %c0_i32, %c0_i32_0 : i32, i32, i32, i32
  }
}

</mosaic_0001>

<llo_original>
// kernel: tpu_custom_call.1
$region0: #{tpu_custom_call.1}
  #allocation0 [shape = 'u32[]', space=smem, size = 0x4, offset = 0x4, fixed_abs, tag = 'smem constant byte address 0x4 - core index']
  #allocation1 [shape = 'u32[144,128]{1,0:T(1,128)}', space=vmem, size = 0x12000, scoped, tag = 'internal scratch']
  #allocation2 [shape = 'f32[10,18,3]{2,1,0:T(8,128)}', space=vmem, size = 0x1e000, scoped, tag = 'scratch operand']
  %s0 = inlined_call_operand.vmem [shape: f32[2,16,16,3], index: 0, kind: input, shape index: {}]
  %s1 = inlined_call_operand.vmem [shape: f32[2,16,16,3], index: 1, kind: input, shape index: {}]
  %s2 = inlined_call_operand.vmem [shape: f32[2,16,16,3], index: 2, kind: input, shape index: {}]
  %s3 = inlined_call_operand.vmem [shape: f32[9,3], index: 3, kind: input, shape index: {}]
  %s4 = inlined_call_operand.vmem [shape: f32[1,3], index: 4, kind: input, shape index: {}]
  %s5 = inlined_call_operand.vmem [shape: f32[3,8], index: 5, kind: input, shape index: {}]
  %s6 = inlined_call_operand.vmem [shape: f32[1,8], index: 6, kind: input, shape index: {}]
  %s7 = inlined_call_operand.vmem [shape: f32[2,16,16,8], index: 7, kind: output, shape index: {}]
  %s8 = sld [smem:[#allocation0]]
  $region61: #{tpu_custom_call.1} parent=0
    _
  %s10 = ssub.s32 1, %s8
  %s11 = scalar_select 0, %s10, %s8
  loop: start=0, step=1, limit=6
  $region2: #{tpu_custom_call.1} parent=0 // loop_pre_header
    _
  $region3: #{tpu_custom_call.1} parent=0 // loop_header
    %s13 = sphi 0, %s17
    %p14 = scmp.ge.s32.totalorder %s13, 6
    %s20 = sphi 0, %s32
    %s21 = sphi 0, %s28
    %s22 = sphi 0, %s20
    %s23 = sphi 0, %s21
    %s24 = sphi 0, %s22
    %s25 = sphi 0, %s23
    %s37 = sphi 0, %s39
    %s40 = sphi 0, %s37
    %s41 = sphi 0, %s40
    %s57 = sphi 0, %s41
    %s73 = sphi 0, %s75
    %s76 = sphi 0, %s73
    %s77 = sphi 0, %s76
    %s93 = sphi 0, %s77
    %s109 = sphi 0, %s111
    %s112 = sphi 0, %s109
    %s113 = sphi 0, %s112
    %s129 = sphi 0, %s113
    %s133 = sphi 0, %s133
    %s135 = sphi 0, %s133
    %s136 = sphi 0, %s135
    %s150 = sphi 0, %s136
    %s154 = sphi 0, %s154
    %s156 = sphi 0, %s154
    %s157 = sphi 0, %s156
    %s171 = sphi 0, %s157
    %s175 = sphi 0, %s175
    %s177 = sphi 0, %s175
    %s178 = sphi 0, %s177
    %s192 = sphi 0, %s178
    %s196 = sphi 0, %s196
    %s198 = sphi 0, %s196
    %s199 = sphi 0, %s198
    %s213 = sphi 0, %s199
    %s221 = sphi 0, %s223
    %s224 = sphi 0, %s221
    %s225 = sphi 0, %s224
    %s241 = sphi 0, %s225
  $region4: #{tpu_custom_call.1} parent=0 // loop_header_branch
    %16 = sbr.rel (%p14) target = $region8
  $region5: #{tpu_custom_call.1} parent=0 // loop_body
    %s18 = ssub.s32 %s13, 1
    %s19 = ssub.s32 %s13, 2
    %s26 = sadd.s32 1, %s21
    %p27 = scmp.ge.s32.totalorder %s26, 2
    %s28 = scalar_select %p27, 0, %s26
    %s29 = sadd.s32 1, %s20
    %s30 = scalar_select %p27, %s29, %s20
    %p31 = scmp.ge.s32.totalorder %s30, 2
    %s32 = scalar_select %p31, 0, %s30
    %s33 = ssub.s32 %s20, %s32
    %s34 = ssub.s32 %s21, %s28
    %s35 = sor.u32 %s33, %s34
    %p36 = scmp.eq.s32.totalorder %s35, 0
    %s38 = sadd.s32 %s37, 1
    %s39 = scalar_select %p36, %s37, %s38
    %p42 = pneg %p36
    %p43 = scmp.eq.s32.totalorder %s13, 3
    %p44 = por %p42, %p43
    %p45 = scmp.ne.s32.totalorder %s37, %s40
    %p46 = scmp.eq.s32.totalorder %s13, 0
    %p47 = por %p45, %p46
    %p48 = scmp.ne.s32.totalorder %s37, %s40
    %p49 = scmp.eq.s32.totalorder %s18, 3
    %p50 = por %p48, %p49
    %p51 = scmp.ne.s32.totalorder %s40, %s41
    %p52 = scmp.eq.s32.totalorder %s18, 0
    %p53 = por %p51, %p52
    %p54 = scmp.ne.s32.totalorder %s40, %s41
    %p55 = scmp.eq.s32.totalorder %s19, 3
    %p56 = por %p54, %p55
    %p58 = scmp.ne.s32.totalorder %s41, %s57
    %p59 = scmp.eq.s32.totalorder %s19, 0
    %p60 = por %p58, %p59
    %s61 = smul.u32 %s21, 8
    %s62 = ssub.s32 %s61, 1
    %p63 = scmp.gt.s32.totalorder %s62, 0
    %s64 = scalar_select %p63, %s62, 0
    %s65 = smul.u32 %s28, 8
    %s66 = ssub.s32 %s65, 1
    %p67 = scmp.gt.s32.totalorder %s66, 0
    %s68 = scalar_select %p67, %s66, 0
    %s69 = ssub.s32 %s20, %s32
    %s70 = ssub.s32 %s64, %s68
    %s71 = sor.u32 %s69, %s70
    %p72 = scmp.eq.s32.totalorder %s71, 0
    %s74 = sadd.s32 %s73, 1
    %s75 = scalar_select %p72, %s73, %s74
    %p78 = pneg %p72
    %p79 = scmp.eq.s32.totalorder %s13, 3
    %p80 = por %p78, %p79
    %p81 = scmp.ne.s32.totalorder %s73, %s76
    %p82 = scmp.eq.s32.totalorder %s13, 0
    %p83 = por %p81, %p82
    %p84 = scmp.ne.s32.totalorder %s73, %s76
    %p85 = scmp.eq.s32.totalorder %s18, 3
    %p86 = por %p84, %p85
    %p87 = scmp.ne.s32.totalorder %s76, %s77
    %p88 = scmp.eq.s32.totalorder %s18, 0
    %p89 = por %p87, %p88
    %p90 = scmp.ne.s32.totalorder %s76, %s77
    %p91 = scmp.eq.s32.totalorder %s19, 3
    %p92 = por %p90, %p91
    %p94 = scmp.ne.s32.totalorder %s77, %s93
    %p95 = scmp.eq.s32.totalorder %s19, 0
    %p96 = por %p94, %p95
    %s97 = sadd.s32 %s21, 1
    %s98 = smul.u32 %s97, 8
    %p99 = scmp.lt.s32.totalorder %s98, 15
    %s100 = scalar_select %p99, %s98, 15
    %s101 = sadd.s32 %s28, 1
    %s102 = smul.u32 %s101, 8
    %p103 = scmp.lt.s32.totalorder %s102, 15
    %s104 = scalar_select %p103, %s102, 15
    %s105 = ssub.s32 %s20, %s32
    %s106 = ssub.s32 %s100, %s104
    %s107 = sor.u32 %s105, %s106
    %p108 = scmp.eq.s32.totalorder %s107, 0
    %s110 = sadd.s32 %s109, 1
    %s111 = scalar_select %p108, %s109, %s110
    %p114 = pneg %p108
    %p115 = scmp.eq.s32.totalorder %s13, 3
    %p116 = por %p114, %p115
    %p117 = scmp.ne.s32.totalorder %s109, %s112
    %p118 = scmp.eq.s32.totalorder %s13, 0
    %p119 = por %p117, %p118
    %p120 = scmp.ne.s32.totalorder %s109, %s112
    %p121 = scmp.eq.s32.totalorder %s18, 3
    %p122 = por %p120, %p121
    %p123 = scmp.ne.s32.totalorder %s112, %s113
    %p124 = scmp.eq.s32.totalorder %s18, 0
    %p125 = por %p123, %p124
    %p126 = scmp.ne.s32.totalorder %s112, %s113
    %p127 = scmp.eq.s32.totalorder %s19, 3
    %p128 = por %p126, %p127
    %p130 = scmp.ne.s32.totalorder %s113, %s129
    %p131 = scmp.eq.s32.totalorder %s19, 0
    %p132 = por %p130, %p131
    %s134 = sadd.s32 %s133, 1
    %p137 = scmp.eq.s32.totalorder %s13, 3
    %p138 = scmp.ne.s32.totalorder %s133, %s135
    %p139 = scmp.eq.s32.totalorder %s13, 0
    %p140 = por %p138, %p139
    %p141 = scmp.ne.s32.totalorder %s133, %s135
    %p142 = scmp.eq.s32.totalorder %s18, 3
    %p143 = por %p141, %p142
    %p144 = scmp.ne.s32.totalorder %s135, %s136
    %p145 = scmp.eq.s32.totalorder %s18, 0
    %p146 = por %p144, %p145
    %p147 = scmp.ne.s32.totalorder %s135, %s136
    %p148 = scmp.eq.s32.totalorder %s19, 3
    %p149 = por %p147, %p148
    %p151 = scmp.ne.s32.totalorder %s136, %s150
    %p152 = scmp.eq.s32.totalorder %s19, 0
    %p153 = por %p151, %p152
    %s155 = sadd.s32 %s154, 1
    %p158 = scmp.eq.s32.totalorder %s13, 3
    %p159 = scmp.ne.s32.totalorder %s154, %s156
    %p160 = scmp.eq.s32.totalorder %s13, 0
    %p161 = por %p159, %p160
    %p162 = scmp.ne.s32.totalorder %s154, %s156
    %p163 = scmp.eq.s32.totalorder %s18, 3
    %p164 = por %p162, %p163
    %p165 = scmp.ne.s32.totalorder %s156, %s157
    %p166 = scmp.eq.s32.totalorder %s18, 0
    %p167 = por %p165, %p166
    %p168 = scmp.ne.s32.totalorder %s156, %s157
    %p169 = scmp.eq.s32.totalorder %s19, 3
    %p170 = por %p168, %p169
    %p172 = scmp.ne.s32.totalorder %s157, %s171
    %p173 = scmp.eq.s32.totalorder %s19, 0
    %p174 = por %p172, %p173
    %s176 = sadd.s32 %s175, 1
    %p179 = scmp.eq.s32.totalorder %s13, 3
    %p180 = scmp.ne.s32.totalorder %s175, %s177
    %p181 = scmp.eq.s32.totalorder %s13, 0
    %p182 = por %p180, %p181
    %p183 = scmp.ne.s32.totalorder %s175, %s177
    %p184 = scmp.eq.s32.totalorder %s18, 3
    %p185 = por %p183, %p184
    %p186 = scmp.ne.s32.totalorder %s177, %s178
    %p187 = scmp.eq.s32.totalorder %s18, 0
    %p188 = por %p186, %p187
    %p189 = scmp.ne.s32.totalorder %s177, %s178
    %p190 = scmp.eq.s32.totalorder %s19, 3
    %p191 = por %p189, %p190
    %p193 = scmp.ne.s32.totalorder %s178, %s192
    %p194 = scmp.eq.s32.totalorder %s19, 0
    %p195 = por %p193, %p194
    %s197 = sadd.s32 %s196, 1
    %p200 = scmp.eq.s32.totalorder %s13, 3
    %p201 = scmp.ne.s32.totalorder %s196, %s198
    %p202 = scmp.eq.s32.totalorder %s13, 0
    %p203 = por %p201, %p202
    %p204 = scmp.ne.s32.totalorder %s196, %s198
    %p205 = scmp.eq.s32.totalorder %s18, 3
    %p206 = por %p204, %p205
    %p207 = scmp.ne.s32.totalorder %s198, %s199
    %p208 = scmp.eq.s32.totalorder %s18, 0
    %p209 = por %p207, %p208
    %p210 = scmp.ne.s32.totalorder %s198, %s199
    %p211 = scmp.eq.s32.totalorder %s19, 3
    %p212 = por %p210, %p211
    %p214 = scmp.ne.s32.totalorder %s199, %s213
    %p215 = scmp.eq.s32.totalorder %s19, 0
    %p216 = por %p214, %p215
    %s217 = ssub.s32 %s20, %s32
    %s218 = ssub.s32 %s21, %s28
    %s219 = sor.u32 %s217, %s218
    %p220 = scmp.eq.s32.totalorder %s219, 0
    %s222 = sadd.s32 %s221, 1
    %s223 = scalar_select %p220, %s221, %s222
    %p226 = pneg %p220
    %p227 = scmp.eq.s32.totalorder %s13, 3
    %p228 = por %p226, %p227
    %p229 = scmp.ne.s32.totalorder %s221, %s224
    %p230 = scmp.eq.s32.totalorder %s13, 0
    %p231 = por %p229, %p230
    %p232 = scmp.ne.s32.totalorder %s221, %s224
    %p233 = scmp.eq.s32.totalorder %s18, 3
    %p234 = por %p232, %p233
    %p235 = scmp.ne.s32.totalorder %s224, %s225
    %p236 = scmp.eq.s32.totalorder %s18, 0
    %p237 = por %p235, %p236
    %p238 = scmp.ne.s32.totalorder %s224, %s225
    %p239 = scmp.eq.s32.totalorder %s19, 3
    %p240 = por %p238, %p239
    %p242 = scmp.ne.s32.totalorder %s225, %s241
    %p243 = scmp.eq.s32.totalorder %s19, 0
    %p244 = por %p242, %p243
    %p245 = scmp.le.s32.totalorder 1, %s13
    %p246 = scmp.lt.s32.totalorder %s13, 5
    %p247 = pnand %p245, %p246
    %p248 = pneg %p247
    // Predicated region
    $region9: #{tpu_custom_call.1} parent=5 // pred_check
      _
    $region10: #{tpu_custom_call.1} parent=5 // pred_check_branch
      %250 = sbr.rel (%p247) target = $region12
    $region11: #{tpu_custom_call.1} parent=5 // pred_region
      %s251 = ssub.s32 %s13, 1
      // Predicated region
      $region13: #{tpu_custom_call.1} parent=11 // pred_check
        %p252 = pneg %p146
      $region14: #{tpu_custom_call.1} parent=11 // pred_check_branch
        %254 = sbr.rel (%p252) target = $region16
      $region15: #{tpu_custom_call.1} parent=11 // pred_region
        _
      $region16: #{tpu_custom_call.1} parent=11 // pred_fallthru
        _
      // Predicated region
      $region17: #{tpu_custom_call.1} parent=11 // pred_check
        %p255 = pneg %p167
      $region18: #{tpu_custom_call.1} parent=11 // pred_check_branch
        %257 = sbr.rel (%p255) target = $region20
      $region19: #{tpu_custom_call.1} parent=11 // pred_region
        _
      $region20: #{tpu_custom_call.1} parent=11 // pred_fallthru
        _
      // Predicated region
      $region21: #{tpu_custom_call.1} parent=11 // pred_check
        %p258 = pneg %p188
      $region22: #{tpu_custom_call.1} parent=11 // pred_check_branch
        %260 = sbr.rel (%p258) target = $region24
      $region23: #{tpu_custom_call.1} parent=11 // pred_region
        _
      $region24: #{tpu_custom_call.1} parent=11 // pred_fallthru
        _
      // Predicated region
      $region25: #{tpu_custom_call.1} parent=11 // pred_check
        %p261 = pneg %p209
      $region26: #{tpu_custom_call.1} parent=11 // pred_check_branch
        %263 = sbr.rel (%p261) target = $region28
      $region27: #{tpu_custom_call.1} parent=11 // pred_region
        _
      $region28: #{tpu_custom_call.1} parent=11 // pred_fallthru
        _
    $region12: #{tpu_custom_call.1} parent=5 // pred_fallthru
      _
    %p264 = scmp.lt.s32.totalorder %s13, 4
    // Predicated region
    $region29: #{tpu_custom_call.1} parent=5 // pred_check
      %p265 = pneg %p264
    $region30: #{tpu_custom_call.1} parent=5 // pred_check_branch
      %267 = sbr.rel (%p265) target = $region32
    $region31: #{tpu_custom_call.1} parent=5 // pred_region
      // Predicated region
      $region33: #{tpu_custom_call.1} parent=31 // pred_check
        %p268 = pneg %p47
      $region34: #{tpu_custom_call.1} parent=31 // pred_check_branch
        %270 = sbr.rel (%p268) target = $region36
      $region35: #{tpu_custom_call.1} parent=31 // pred_region
        %s271 = smul.u32 8, %s21
        %p272 = scmp.lt.s32.totalorder %s20, 1
        %s273 = scalar_select %p272, %s20, 1
        %p274 = scmp.lt.s32.totalorder %s271, 15
        %s275 = scalar_select %p274, %s271, 15
        %s276 = smul.addr %s275, 2
        %s277 = smul.addr %s273, 32
        %s278 = sadd.s32 %s276, %s277
        %s279 = smul.addr %s278, 8
        %s280 = scalar_lea.vmem %s0, %s279
        %s281 = smul.u32 8, %s21
      $region36: #{tpu_custom_call.1} parent=31 // pred_fallthru
        _
      // Predicated region
      $region37: #{tpu_custom_call.1} parent=31 // pred_check
        %p282 = pneg %p83
      $region38: #{tpu_custom_call.1} parent=31 // pred_check_branch
        %284 = sbr.rel (%p282) target = $region40
      $region39: #{tpu_custom_call.1} parent=31 // pred_region
        %s285 = smul.u32 %s21, 8
        %s286 = ssub.s32 %s285, 1
        %p287 = scmp.gt.s32.totalorder %s286, 0
        %s288 = scalar_select %p287, %s286, 0
        %p289 = scmp.lt.s32.totalorder %s20, 1
        %s290 = scalar_select %p289, %s20, 1
        %p291 = scmp.lt.s32.totalorder %s288, 15
        %s292 = scalar_select %p291, %s288, 15
        %s293 = smul.addr %s292, 2
        %s294 = smul.addr %s290, 32
        %s295 = sadd.s32 %s293, %s294
        %s296 = smul.addr %s295, 8
        %s297 = scalar_lea.vmem %s1, %s296
        %s298 = smul.u32 %s21, 8
        %s299 = ssub.s32 %s298, 1
        %p300 = scmp.gt.s32.totalorder %s299, 0
        %s301 = scalar_select %p300, %s299, 0
      $region40: #{tpu_custom_call.1} parent=31 // pred_fallthru
        _
      // Predicated region
      $region41: #{tpu_custom_call.1} parent=31 // pred_check
        %p302 = pneg %p119
      $region42: #{tpu_custom_call.1} parent=31 // pred_check_branch
        %304 = sbr.rel (%p302) target = $region44
      $region43: #{tpu_custom_call.1} parent=31 // pred_region
        %s305 = sadd.s32 %s21, 1
        %s306 = smul.u32 %s305, 8
        %p307 = scmp.lt.s32.totalorder %s306, 15
        %s308 = scalar_select %p307, %s306, 15
        %p309 = scmp.lt.s32.totalorder %s20, 1
        %s310 = scalar_select %p309, %s20, 1
        %p311 = scmp.lt.s32.totalorder %s308, 15
        %s312 = scalar_select %p311, %s308, 15
        %s313 = smul.addr %s312, 2
        %s314 = smul.addr %s310, 32
        %s315 = sadd.s32 %s313, %s314
        %s316 = smul.addr %s315, 8
        %s317 = scalar_lea.vmem %s2, %s316
        %s318 = sadd.s32 %s21, 1
        %s319 = smul.u32 %s318, 8
        %p320 = scmp.lt.s32.totalorder %s319, 15
        %s321 = scalar_select %p320, %s319, 15
      $region44: #{tpu_custom_call.1} parent=31 // pred_fallthru
        _
    $region32: #{tpu_custom_call.1} parent=5 // pred_fallthru
      _
    %p322 = scmp.le.s32.totalorder 1, %s13
    %p323 = scmp.lt.s32.totalorder %s13, 5
    %p324 = pnand %p322, %p323
    %p325 = pneg %p324
    // Predicated region
    $region45: #{tpu_custom_call.1} parent=5 // pred_check
      _
    $region46: #{tpu_custom_call.1} parent=5 // pred_check_branch
      %327 = sbr.rel (%p324) target = $region48
    $region47: #{tpu_custom_call.1} parent=5 // pred_region
      %s328 = ssub.s32 %s13, 1
      %s329 = smul.u32 8, %s23
      %p330 = scmp.lt.s32.totalorder %s22, 1
      %s331 = scalar_select %p330, %s22, 1
      %p332 = scmp.lt.s32.totalorder %s329, 15
      %s333 = scalar_select %p332, %s329, 15
      %s334 = smul.addr %s333, 2
      %s335 = smul.addr %s331, 32
      %s336 = sadd.s32 %s334, %s335
      %s337 = smul.addr %s336, 8
      %s338 = scalar_lea.vmem %s0, %s337
      %p339 = pneg %p53
      %p340 = pneg %p50
      %s341 = smul.u32 %s23, 8
      %s342 = ssub.s32 %s341, 1
      %p343 = scmp.gt.s32.totalorder %s342, 0
      %s344 = scalar_select %p343, %s342, 0
      %p345 = scmp.lt.s32.totalorder %s22, 1
      %s346 = scalar_select %p345, %s22, 1
      %p347 = scmp.lt.s32.totalorder %s344, 15
      %s348 = scalar_select %p347, %s344, 15
      %s349 = smul.addr %s348, 2
      %s350 = smul.addr %s346, 32
      %s351 = sadd.s32 %s349, %s350
      %s352 = smul.addr %s351, 8
      %s353 = scalar_lea.vmem %s1, %s352
      %p354 = pneg %p89
      %p355 = pneg %p86
      %s356 = sadd.s32 %s23, 1
      %s357 = smul.u32 %s356, 8
      %p358 = scmp.lt.s32.totalorder %s357, 15
      %s359 = scalar_select %p358, %s357, 15
      %p360 = scmp.lt.s32.totalorder %s22, 1
      %s361 = scalar_select %p360, %s22, 1
      %p362 = scmp.lt.s32.totalorder %s359, 15
      %s363 = scalar_select %p362, %s359, 15
      %s364 = smul.addr %s363, 2
      %s365 = smul.addr %s361, 32
      %s366 = sadd.s32 %s364, %s365
      %s367 = smul.addr %s366, 8
      %s368 = scalar_lea.vmem %s2, %s367
      %p369 = pneg %p125
      %p370 = pneg %p122
      %p371 = pneg %p146
      %p372 = pneg %p143
      %p373 = pneg %p167
      %p374 = pneg %p164
      %p375 = pneg %p188
      %p376 = pneg %p185
      %p377 = pneg %p209
      %p378 = pneg %p206
      %p379 = pneg %p237
      %p380 = pneg %p234
      %s381 = smul.u32 8, %s23
      %p382 = scmp.lt.s32.totalorder %s22, 1
      %s383 = scalar_select %p382, %s22, 1
      %p384 = scmp.lt.s32.totalorder %s381, 15
      %s385 = scalar_select %p384, %s381, 15
      %s386 = smul.addr %s385, 2
      %s387 = smul.addr %s383, 32
      %s388 = sadd.s32 %s386, %s387
      %s389 = smul.addr %s388, 8
      %s390 = scalar_lea.vmem %s7, %s389
      %s391 = smul.u32 8, %s23
      %p392 = scmp.lt.s32.totalorder %s22, 1
      %s393 = scalar_select %p392, %s22, 1
      %p394 = scmp.lt.s32.totalorder %s391, 15
      %s395 = scalar_select %p394, %s391, 15
      %s396 = smul.addr %s395, 2
      %s397 = smul.addr %s393, 32
      %s398 = sadd.s32 %s396, %s397
      %s399 = smul.addr %s398, 8
      %s400 = scalar_lea.vmem %s0, %s399
      %s401 = smul.u32 8, %s23
      %s402 = smul.u32 %s23, 8
      %s403 = ssub.s32 %s402, 1
      %p404 = scmp.gt.s32.totalorder %s403, 0
      %s405 = scalar_select %p404, %s403, 0
      %p406 = scmp.lt.s32.totalorder %s22, 1
      %s407 = scalar_select %p406, %s22, 1
      %p408 = scmp.lt.s32.totalorder %s405, 15
      %s409 = scalar_select %p408, %s405, 15
      %s410 = smul.addr %s409, 2
      %s411 = smul.addr %s407, 32
      %s412 = sadd.s32 %s410, %s411
      %s413 = smul.addr %s412, 8
      %s414 = scalar_lea.vmem %s1, %s413
      %s415 = smul.u32 %s23, 8
      %s416 = ssub.s32 %s415, 1
      %p417 = scmp.gt.s32.totalorder %s416, 0
      %s418 = scalar_select %p417, %s416, 0
      %s419 = sadd.s32 %s23, 1
      %s420 = smul.u32 %s419, 8
      %p421 = scmp.lt.s32.totalorder %s420, 15
      %s422 = scalar_select %p421, %s420, 15
      %p423 = scmp.lt.s32.totalorder %s22, 1
      %s424 = scalar_select %p423, %s22, 1
      %p425 = scmp.lt.s32.totalorder %s422, 15
      %s426 = scalar_select %p425, %s422, 15
      %s427 = smul.addr %s426, 2
      %s428 = smul.addr %s424, 32
      %s429 = sadd.s32 %s427, %s428
      %s430 = smul.addr %s429, 8
      %s431 = scalar_lea.vmem %s2, %s430
      %s432 = sadd.s32 %s23, 1
      %s433 = smul.u32 %s432, 8
      %p434 = scmp.lt.s32.totalorder %s433, 15
      %s435 = scalar_select %p434, %s433, 15
      %s436 = smul.u32 8, %s23
      %p437 = scmp.lt.s32.totalorder %s22, 1
      %s438 = scalar_select %p437, %s22, 1
      %p439 = scmp.lt.s32.totalorder %s436, 15
      %s440 = scalar_select %p439, %s436, 15
      %s441 = smul.addr %s440, 2
      %s442 = smul.addr %s438, 32
      %s443 = sadd.s32 %s441, %s442
      %s444 = smul.addr %s443, 8
      %s445 = scalar_lea.vmem %s7, %s444
      %s446 = smul.u32 8, %s23
      %v447 = vld [vmem:[%s414] sm:$0xff]
      %v448 = vld [vmem:[%s414 + $0x8] sm:$0xff]
      %p449 = scmp.gt.s32.totalorder %s23, 0
      %s450 = scalar_select %p449, 1, 0
      %s451 = scvt.s32.f32 %s450
      %v452 = vstv %s451
      %v453 = vmul.f32 %v447, %v452
      %v454 = vmul.f32 %v448, %v452
      %v455 = vld [vmem:[%s431] sm:$0xff]
      %v456 = vld [vmem:[%s431 + $0x8] sm:$0xff]
      %p457 = scmp.lt.s32.totalorder %s23, 1
      %s458 = scalar_select %p457, 1, 0
      %s459 = scvt.s32.f32 %s458
      %v460 = vstv %s459
      %v461 = vmul.f32 %v455, %v460
      %v462 = vmul.f32 %v456, %v460
      %vm463 = vcmask 23552
      %464 = vst.msk [vmem:[#allocation2 + $0x1] sm:$0xff] %vm463, %v453
      %465 = vst.msk [vmem:[#allocation2 + $0x9] sm:$0xff] %vm463, %v454
      %v466 = vld [vmem:[%s400] sm:$0xff]
      %v467 = vld [vmem:[%s400 + $0x8] sm:$0xff]
      %v468 = vld [vmem:[%s400 + $0x10] sm:$0xff]
      %v469 = vld [vmem:[%s400 + $0x18] sm:$0xff]
      %v470 = vld [vmem:[%s400 + $0x20] sm:$0xff]
      %v471 = vld [vmem:[%s400 + $0x28] sm:$0xff]
      %v472 = vld [vmem:[%s400 + $0x30] sm:$0xff]
      %v473 = vld [vmem:[%s400 + $0x38] sm:$0xff]
      %v474 = vld [vmem:[%s400 + $0x40] sm:$0xff]
      %v475 = vld [vmem:[%s400 + $0x48] sm:$0xff]
      %v476 = vld [vmem:[%s400 + $0x50] sm:$0xff]
      %v477 = vld [vmem:[%s400 + $0x58] sm:$0xff]
      %v478 = vld [vmem:[%s400 + $0x60] sm:$0xff]
      %v479 = vld [vmem:[%s400 + $0x68] sm:$0xff]
      %v480 = vld [vmem:[%s400 + $0x70] sm:$0xff]
      %v481 = vld [vmem:[%s400 + $0x78] sm:$0xff]
      %s482 = scalar_lea.vmem [#allocation2], 24
      %483 = vst.msk [vmem:[%s482 + $0x1] sm:$0xff] %vm463, %v466
      %484 = vst.msk [vmem:[%s482 + $0x9] sm:$0xff] %vm463, %v467
      %485 = vst.msk [vmem:[%s482 + $0x19] sm:$0xff] %vm463, %v468
      %486 = vst.msk [vmem:[%s482 + $0x21] sm:$0xff] %vm463, %v469
      %487 = vst.msk [vmem:[%s482 + $0x31] sm:$0xff] %vm463, %v470
      %488 = vst.msk [vmem:[%s482 + $0x39] sm:$0xff] %vm463, %v471
      %489 = vst.msk [vmem:[%s482 + $0x49] sm:$0xff] %vm463, %v472
      %490 = vst.msk [vmem:[%s482 + $0x51] sm:$0xff] %vm463, %v473
      %491 = vst.msk [vmem:[%s482 + $0x61] sm:$0xff] %vm463, %v474
      %492 = vst.msk [vmem:[%s482 + $0x69] sm:$0xff] %vm463, %v475
      %493 = vst.msk [vmem:[%s482 + $0x79] sm:$0xff] %vm463, %v476
      %494 = vst.msk [vmem:[%s482 + $0x81] sm:$0xff] %vm463, %v477
      %495 = vst.msk [vmem:[%s482 + $0x91] sm:$0xff] %vm463, %v478
      %496 = vst.msk [vmem:[%s482 + $0x99] sm:$0xff] %vm463, %v479
      %497 = vst.msk [vmem:[%s482 + $0xa9] sm:$0xff] %vm463, %v480
      %498 = vst.msk [vmem:[%s482 + $0xb1] sm:$0xff] %vm463, %v481
      %s499 = scalar_lea.vmem [#allocation2], 216
      %500 = vst.msk [vmem:[%s499 + $0x1] sm:$0xff] %vm463, %v461
      %501 = vst.msk [vmem:[%s499 + $0x9] sm:$0xff] %vm463, %v462
      %vm502 = vcmask 16384
      %503 = vst.msk [vmem:[#allocation2] sm:$0x1] %vm502, 0.0
      %504 = vst.msk [vmem:[#allocation2 + $0x18] sm:$0x1] %vm502, 0.0
      %505 = vst.msk [vmem:[#allocation2 + $0x30] sm:$0x1] %vm502, 0.0
      %506 = vst.msk [vmem:[#allocation2 + $0x48] sm:$0x1] %vm502, 0.0
      %507 = vst.msk [vmem:[#allocation2 + $0x60] sm:$0x1] %vm502, 0.0
      %508 = vst.msk [vmem:[#allocation2 + $0x78] sm:$0x1] %vm502, 0.0
      %509 = vst.msk [vmem:[#allocation2 + $0x90] sm:$0x1] %vm502, 0.0
      %510 = vst.msk [vmem:[#allocation2 + $0xa8] sm:$0x1] %vm502, 0.0
      %511 = vst.msk [vmem:[#allocation2 + $0xc0] sm:$0x1] %vm502, 0.0
      %512 = vst.msk [vmem:[#allocation2 + $0xd8] sm:$0x1] %vm502, 0.0
      %513 = vst.msk [vmem:[#allocation2 + $0x11] sm:$0x1] %vm502, 0.0
      %514 = vst.msk [vmem:[#allocation2 + $0x29] sm:$0x1] %vm502, 0.0
      %515 = vst.msk [vmem:[#allocation2 + $0x41] sm:$0x1] %vm502, 0.0
      %516 = vst.msk [vmem:[#allocation2 + $0x59] sm:$0x1] %vm502, 0.0
      %517 = vst.msk [vmem:[#allocation2 + $0x71] sm:$0x1] %vm502, 0.0
      %518 = vst.msk [vmem:[#allocation2 + $0x89] sm:$0x1] %vm502, 0.0
      %519 = vst.msk [vmem:[#allocation2 + $0xa1] sm:$0x1] %vm502, 0.0
      %520 = vst.msk [vmem:[#allocation2 + $0xb9] sm:$0x1] %vm502, 0.0
      %521 = vst.msk [vmem:[#allocation2 + $0xd1] sm:$0x1] %vm502, 0.0
      %522 = vst.msk [vmem:[#allocation2 + $0xe9] sm:$0x1] %vm502, 0.0
      %v523 = vld [vmem:[#allocation2] sm:$0xff]
      %v524 = vld [vmem:[#allocation2 + $0x8] sm:$0xff]
      %v525 = vld [vmem:[#allocation2 + $0x18] sm:$0xff]
      %v526 = vld [vmem:[#allocation2 + $0x20] sm:$0xff]
      %v527 = vld [vmem:[#allocation2 + $0x30] sm:$0xff]
      %v528 = vld [vmem:[#allocation2 + $0x38] sm:$0xff]
      %v529 = vld [vmem:[#allocation2 + $0x48] sm:$0xff]
      %v530 = vld [vmem:[#allocation2 + $0x50] sm:$0xff]
      %v531 = vld [vmem:[#allocation2 + $0x60] sm:$0xff]
      %v532 = vld [vmem:[#allocation2 + $0x68] sm:$0xff]
      %v533 = vld [vmem:[#allocation2 + $0x78] sm:$0xff]
      %v534 = vld [vmem:[#allocation2 + $0x80] sm:$0xff]
      %v535 = vld [vmem:[#allocation2 + $0x90] sm:$0xff]
      %v536 = vld [vmem:[#allocation2 + $0x98] sm:$0xff]
      %v537 = vld [vmem:[#allocation2 + $0xa8] sm:$0xff]
      %v538 = vld [vmem:[#allocation2 + $0xb0] sm:$0xff]
      %v539 = vld [vmem:[%s3] sm:$0x1]
      %v540 = vlaneseq
      %v541 = vshrl.u32 %v540, 7
      %v542 = vsub.s32 0, %v541
      %v543 = vrot.slane %v539, %v542
      %v544 = vmul.f32 %v523, %v543
      %v545 = vmul.f32 %v524, %v543
      %v546 = vmul.f32 %v525, %v543
      %v547 = vmul.f32 %v526, %v543
      %v548 = vmul.f32 %v527, %v543
      %v549 = vmul.f32 %v528, %v543
      %v550 = vmul.f32 %v529, %v543
      %v551 = vmul.f32 %v530, %v543
      %v552 = vmul.f32 %v531, %v543
      %v553 = vmul.f32 %v532, %v543
      %v554 = vmul.f32 %v533, %v543
      %v555 = vmul.f32 %v534, %v543
      %v556 = vmul.f32 %v535, %v543
      %v557 = vmul.f32 %v536, %v543
      %v558 = vmul.f32 %v537, %v543
      %v559 = vmul.f32 %v538, %v543
      %v560 = vadd.f32 %v544, 0.0
      %v561 = vadd.f32 %v545, 0.0
      %v562 = vadd.f32 %v546, 0.0
      %v563 = vadd.f32 %v547, 0.0
      %v564 = vadd.f32 %v548, 0.0
      %v565 = vadd.f32 %v549, 0.0
      %v566 = vadd.f32 %v550, 0.0
      %v567 = vadd.f32 %v551, 0.0
      %v568 = vadd.f32 %v552, 0.0
      %v569 = vadd.f32 %v553, 0.0
      %v570 = vadd.f32 %v554, 0.0
      %v571 = vadd.f32 %v555, 0.0
      %v572 = vadd.f32 %v556, 0.0
      %v573 = vadd.f32 %v557, 0.0
      %v574 = vadd.f32 %v558, 0.0
      %v575 = vadd.f32 %v559, 0.0
      %v576 = vld [vmem:[#allocation2 + $0x1] sm:$0xff]
      %v577 = vld [vmem:[#allocation2 + $0x9] sm:$0xff]
      %v578 = vld [vmem:[#allocation2 + $0x19] sm:$0xff]
      %v579 = vld [vmem:[#allocation2 + $0x21] sm:$0xff]
      %v580 = vld [vmem:[#allocation2 + $0x31] sm:$0xff]
      %v581 = vld [vmem:[#allocation2 + $0x39] sm:$0xff]
      %v582 = vld [vmem:[#allocation2 + $0x49] sm:$0xff]
      %v583 = vld [vmem:[#allocation2 + $0x51] sm:$0xff]
      %v584 = vld [vmem:[#allocation2 + $0x61] sm:$0xff]
      %v585 = vld [vmem:[#allocation2 + $0x69] sm:$0xff]
      %v586 = vld [vmem:[#allocation2 + $0x79] sm:$0xff]
      %v587 = vld [vmem:[#allocation2 + $0x81] sm:$0xff]
      %v588 = vld [vmem:[#allocation2 + $0x91] sm:$0xff]
      %v589 = vld [vmem:[#allocation2 + $0x99] sm:$0xff]
      %v590 = vld [vmem:[#allocation2 + $0xa9] sm:$0xff]
      %v591 = vld [vmem:[#allocation2 + $0xb1] sm:$0xff]
      %v592 = vld [vmem:[%s3 + $0x1] sm:$0x1]
      %v593 = vlaneseq
      %v594 = vshrl.u32 %v593, 7
      %v595 = vsub.s32 0, %v594
      %v596 = vrot.slane %v592, %v595
      %v597 = vmul.f32 %v576, %v596
      %v598 = vmul.f32 %v577, %v596
      %v599 = vmul.f32 %v578, %v596
      %v600 = vmul.f32 %v579, %v596
      %v601 = vmul.f32 %v580, %v596
      %v602 = vmul.f32 %v581, %v596
      %v603 = vmul.f32 %v582, %v596
      %v604 = vmul.f32 %v583, %v596
      %v605 = vmul.f32 %v584, %v596
      %v606 = vmul.f32 %v585, %v596
      %v607 = vmul.f32 %v586, %v596
      %v608 = vmul.f32 %v587, %v596
      %v609 = vmul.f32 %v588, %v596
      %v610 = vmul.f32 %v589, %v596
      %v611 = vmul.f32 %v590, %v596
      %v612 = vmul.f32 %v591, %v596
      %v613 = vadd.f32 %v560, %v597
      %v614 = vadd.f32 %v561, %v598
      %v615 = vadd.f32 %v562, %v599
      %v616 = vadd.f32 %v563, %v600
      %v617 = vadd.f32 %v564, %v601
      %v618 = vadd.f32 %v565, %v602
      %v619 = vadd.f32 %v566, %v603
      %v620 = vadd.f32 %v567, %v604
      %v621 = vadd.f32 %v568, %v605
      %v622 = vadd.f32 %v569, %v606
      %v623 = vadd.f32 %v570, %v607
      %v624 = vadd.f32 %v571, %v608
      %v625 = vadd.f32 %v572, %v609
      %v626 = vadd.f32 %v573, %v610
      %v627 = vadd.f32 %v574, %v611
      %v628 = vadd.f32 %v575, %v612
      %v629 = vld [vmem:[#allocation2 + $0x2] sm:$0xff]
      %v630 = vld [vmem:[#allocation2 + $0xa] sm:$0xff]
      %v631 = vld [vmem:[#allocation2 + $0x1a] sm:$0xff]
      %v632 = vld [vmem:[#allocation2 + $0x22] sm:$0xff]
      %v633 = vld [vmem:[#allocation2 + $0x32] sm:$0xff]
      %v634 = vld [vmem:[#allocation2 + $0x3a] sm:$0xff]
      %v635 = vld [vmem:[#allocation2 + $0x4a] sm:$0xff]
      %v636 = vld [vmem:[#allocation2 + $0x52] sm:$0xff]
      %v637 = vld [vmem:[#allocation2 + $0x62] sm:$0xff]
      %v638 = vld [vmem:[#allocation2 + $0x6a] sm:$0xff]
      %v639 = vld [vmem:[#allocation2 + $0x7a] sm:$0xff]
      %v640 = vld [vmem:[#allocation2 + $0x82] sm:$0xff]
      %v641 = vld [vmem:[#allocation2 + $0x92] sm:$0xff]
      %v642 = vld [vmem:[#allocation2 + $0x9a] sm:$0xff]
      %v643 = vld [vmem:[#allocation2 + $0xaa] sm:$0xff]
      %v644 = vld [vmem:[#allocation2 + $0xb2] sm:$0xff]
      %v645 = vld [vmem:[%s3 + $0x2] sm:$0x1]
      %v646 = vlaneseq
      %v647 = vshrl.u32 %v646, 7
      %v648 = vsub.s32 0, %v647
      %v649 = vrot.slane %v645, %v648
      %v650 = vmul.f32 %v629, %v649
      %v651 = vmul.f32 %v630, %v649
      %v652 = vmul.f32 %v631, %v649
      %v653 = vmul.f32 %v632, %v649
      %v654 = vmul.f32 %v633, %v649
      %v655 = vmul.f32 %v634, %v649
      %v656 = vmul.f32 %v635, %v649
      %v657 = vmul.f32 %v636, %v649
      %v658 = vmul.f32 %v637, %v649
      %v659 = vmul.f32 %v638, %v649
      %v660 = vmul.f32 %v639, %v649
      %v661 = vmul.f32 %v640, %v649
      %v662 = vmul.f32 %v641, %v649
      %v663 = vmul.f32 %v642, %v649
      %v664 = vmul.f32 %v643, %v649
      %v665 = vmul.f32 %v644, %v649
      %v666 = vadd.f32 %v613, %v650
      %v667 = vadd.f32 %v614, %v651
      %v668 = vadd.f32 %v615, %v652
      %v669 = vadd.f32 %v616, %v653
      %v670 = vadd.f32 %v617, %v654
      %v671 = vadd.f32 %v618, %v655
      %v672 = vadd.f32 %v619, %v656
      %v673 = vadd.f32 %v620, %v657
      %v674 = vadd.f32 %v621, %v658
      %v675 = vadd.f32 %v622, %v659
      %v676 = vadd.f32 %v623, %v660
      %v677 = vadd.f32 %v624, %v661
      %v678 = vadd.f32 %v625, %v662
      %v679 = vadd.f32 %v626, %v663
      %v680 = vadd.f32 %v627, %v664
      %v681 = vadd.f32 %v628, %v665
      %v682 = vld [vmem:[%s482] sm:$0xff]
      %v683 = vld [vmem:[%s482 + $0x8] sm:$0xff]
      %v684 = vld [vmem:[%s482 + $0x18] sm:$0xff]
      %v685 = vld [vmem:[%s482 + $0x20] sm:$0xff]
      %v686 = vld [vmem:[%s482 + $0x30] sm:$0xff]
      %v687 = vld [vmem:[%s482 + $0x38] sm:$0xff]
      %v688 = vld [vmem:[%s482 + $0x48] sm:$0xff]
      %v689 = vld [vmem:[%s482 + $0x50] sm:$0xff]
      %v690 = vld [vmem:[%s482 + $0x60] sm:$0xff]
      %v691 = vld [vmem:[%s482 + $0x68] sm:$0xff]
      %v692 = vld [vmem:[%s482 + $0x78] sm:$0xff]
      %v693 = vld [vmem:[%s482 + $0x80] sm:$0xff]
      %v694 = vld [vmem:[%s482 + $0x90] sm:$0xff]
      %v695 = vld [vmem:[%s482 + $0x98] sm:$0xff]
      %v696 = vld [vmem:[%s482 + $0xa8] sm:$0xff]
      %v697 = vld [vmem:[%s482 + $0xb0] sm:$0xff]
      %v698 = vld [vmem:[%s3 + $0x3] sm:$0x1]
      %v699 = vlaneseq
      %v700 = vshrl.u32 %v699, 7
      %v701 = vsub.s32 0, %v700
      %v702 = vrot.slane %v698, %v701
      %v703 = vmul.f32 %v682, %v702
      %v704 = vmul.f32 %v683, %v702
      %v705 = vmul.f32 %v684, %v702
      %v706 = vmul.f32 %v685, %v702
      %v707 = vmul.f32 %v686, %v702
      %v708 = vmul.f32 %v687, %v702
      %v709 = vmul.f32 %v688, %v702
      %v710 = vmul.f32 %v689, %v702
      %v711 = vmul.f32 %v690, %v702
      %v712 = vmul.f32 %v691, %v702
      %v713 = vmul.f32 %v692, %v702
      %v714 = vmul.f32 %v693, %v702
      %v715 = vmul.f32 %v694, %v702
      %v716 = vmul.f32 %v695, %v702
      %v717 = vmul.f32 %v696, %v702
      %v718 = vmul.f32 %v697, %v702
      %v719 = vadd.f32 %v666, %v703
      %v720 = vadd.f32 %v667, %v704
      %v721 = vadd.f32 %v668, %v705
      %v722 = vadd.f32 %v669, %v706
      %v723 = vadd.f32 %v670, %v707
      %v724 = vadd.f32 %v671, %v708
      %v725 = vadd.f32 %v672, %v709
      %v726 = vadd.f32 %v673, %v710
      %v727 = vadd.f32 %v674, %v711
      %v728 = vadd.f32 %v675, %v712
      %v729 = vadd.f32 %v676, %v713
      %v730 = vadd.f32 %v677, %v714
      %v731 = vadd.f32 %v678, %v715
      %v732 = vadd.f32 %v679, %v716
      %v733 = vadd.f32 %v680, %v717
      %v734 = vadd.f32 %v681, %v718
      %v735 = vld [vmem:[%s482 + $0x1] sm:$0xff]
      %v736 = vld [vmem:[%s482 + $0x9] sm:$0xff]
      %v737 = vld [vmem:[%s482 + $0x19] sm:$0xff]
      %v738 = vld [vmem:[%s482 + $0x21] sm:$0xff]
      %v739 = vld [vmem:[%s482 + $0x31] sm:$0xff]
      %v740 = vld [vmem:[%s482 + $0x39] sm:$0xff]
      %v741 = vld [vmem:[%s482 + $0x49] sm:$0xff]
      %v742 = vld [vmem:[%s482 + $0x51] sm:$0xff]
      %v743 = vld [vmem:[%s482 + $0x61] sm:$0xff]
      %v744 = vld [vmem:[%s482 + $0x69] sm:$0xff]
      %v745 = vld [vmem:[%s482 + $0x79] sm:$0xff]
      %v746 = vld [vmem:[%s482 + $0x81] sm:$0xff]
      %v747 = vld [vmem:[%s482 + $0x91] sm:$0xff]
      %v748 = vld [vmem:[%s482 + $0x99] sm:$0xff]
      %v749 = vld [vmem:[%s482 + $0xa9] sm:$0xff]
      %v750 = vld [vmem:[%s482 + $0xb1] sm:$0xff]
      %v751 = vld [vmem:[%s3 + $0x4] sm:$0x1]
      %v752 = vlaneseq
      %v753 = vshrl.u32 %v752, 7
      %v754 = vsub.s32 0, %v753
      %v755 = vrot.slane %v751, %v754
      %v756 = vmul.f32 %v735, %v755
      %v757 = vmul.f32 %v736, %v755
      %v758 = vmul.f32 %v737, %v755
      %v759 = vmul.f32 %v738, %v755
      %v760 = vmul.f32 %v739, %v755
      %v761 = vmul.f32 %v740, %v755
      %v762 = vmul.f32 %v741, %v755
      %v763 = vmul.f32 %v742, %v755
      %v764 = vmul.f32 %v743, %v755
      %v765 = vmul.f32 %v744, %v755
      %v766 = vmul.f32 %v745, %v755
      %v767 = vmul.f32 %v746, %v755
      %v768 = vmul.f32 %v747, %v755
      %v769 = vmul.f32 %v748, %v755
      %v770 = vmul.f32 %v749, %v755
      %v771 = vmul.f32 %v750, %v755
      %v772 = vadd.f32 %v719, %v756
      %v773 = vadd.f32 %v720, %v757
      %v774 = vadd.f32 %v721, %v758
      %v775 = vadd.f32 %v722, %v759
      %v776 = vadd.f32 %v723, %v760
      %v777 = vadd.f32 %v724, %v761
      %v778 = vadd.f32 %v725, %v762
      %v779 = vadd.f32 %v726, %v763
      %v780 = vadd.f32 %v727, %v764
      %v781 = vadd.f32 %v728, %v765
      %v782 = vadd.f32 %v729, %v766
      %v783 = vadd.f32 %v730, %v767
      %v784 = vadd.f32 %v731, %v768
      %v785 = vadd.f32 %v732, %v769
      %v786 = vadd.f32 %v733, %v770
      %v787 = vadd.f32 %v734, %v771
      %v788 = vld [vmem:[%s482 + $0x2] sm:$0xff]
      %v789 = vld [vmem:[%s482 + $0xa] sm:$0xff]
      %v790 = vld [vmem:[%s482 + $0x1a] sm:$0xff]
      %v791 = vld [vmem:[%s482 + $0x22] sm:$0xff]
      %v792 = vld [vmem:[%s482 + $0x32] sm:$0xff]
      %v793 = vld [vmem:[%s482 + $0x3a] sm:$0xff]
      %v794 = vld [vmem:[%s482 + $0x4a] sm:$0xff]
      %v795 = vld [vmem:[%s482 + $0x52] sm:$0xff]
      %v796 = vld [vmem:[%s482 + $0x62] sm:$0xff]
      %v797 = vld [vmem:[%s482 + $0x6a] sm:$0xff]
      %v798 = vld [vmem:[%s482 + $0x7a] sm:$0xff]
      %v799 = vld [vmem:[%s482 + $0x82] sm:$0xff]
      %v800 = vld [vmem:[%s482 + $0x92] sm:$0xff]
      %v801 = vld [vmem:[%s482 + $0x9a] sm:$0xff]
      %v802 = vld [vmem:[%s482 + $0xaa] sm:$0xff]
      %v803 = vld [vmem:[%s482 + $0xb2] sm:$0xff]
      %v804 = vld [vmem:[%s3 + $0x5] sm:$0x1]
      %v805 = vlaneseq
      %v806 = vshrl.u32 %v805, 7
      %v807 = vsub.s32 0, %v806
      %v808 = vrot.slane %v804, %v807
      %v809 = vmul.f32 %v788, %v808
      %v810 = vmul.f32 %v789, %v808
      %v811 = vmul.f32 %v790, %v808
      %v812 = vmul.f32 %v791, %v808
      %v813 = vmul.f32 %v792, %v808
      %v814 = vmul.f32 %v793, %v808
      %v815 = vmul.f32 %v794, %v808
      %v816 = vmul.f32 %v795, %v808
      %v817 = vmul.f32 %v796, %v808
      %v818 = vmul.f32 %v797, %v808
      %v819 = vmul.f32 %v798, %v808
      %v820 = vmul.f32 %v799, %v808
      %v821 = vmul.f32 %v800, %v808
      %v822 = vmul.f32 %v801, %v808
      %v823 = vmul.f32 %v802, %v808
      %v824 = vmul.f32 %v803, %v808
      %v825 = vadd.f32 %v772, %v809
      %v826 = vadd.f32 %v773, %v810
      %v827 = vadd.f32 %v774, %v811
      %v828 = vadd.f32 %v775, %v812
      %v829 = vadd.f32 %v776, %v813
      %v830 = vadd.f32 %v777, %v814
      %v831 = vadd.f32 %v778, %v815
      %v832 = vadd.f32 %v779, %v816
      %v833 = vadd.f32 %v780, %v817
      %v834 = vadd.f32 %v781, %v818
      %v835 = vadd.f32 %v782, %v819
      %v836 = vadd.f32 %v783, %v820
      %v837 = vadd.f32 %v784, %v821
      %v838 = vadd.f32 %v785, %v822
      %v839 = vadd.f32 %v786, %v823
      %v840 = vadd.f32 %v787, %v824
      %s841 = scalar_lea.vmem [#allocation2], 48
      %v842 = vld [vmem:[%s841] sm:$0xff]
      %v843 = vld [vmem:[%s841 + $0x8] sm:$0xff]
      %v844 = vld [vmem:[%s841 + $0x18] sm:$0xff]
      %v845 = vld [vmem:[%s841 + $0x20] sm:$0xff]
      %v846 = vld [vmem:[%s841 + $0x30] sm:$0xff]
      %v847 = vld [vmem:[%s841 + $0x38] sm:$0xff]
      %v848 = vld [vmem:[%s841 + $0x48] sm:$0xff]
      %v849 = vld [vmem:[%s841 + $0x50] sm:$0xff]
      %v850 = vld [vmem:[%s841 + $0x60] sm:$0xff]
      %v851 = vld [vmem:[%s841 + $0x68] sm:$0xff]
      %v852 = vld [vmem:[%s841 + $0x78] sm:$0xff]
      %v853 = vld [vmem:[%s841 + $0x80] sm:$0xff]
      %v854 = vld [vmem:[%s841 + $0x90] sm:$0xff]
      %v855 = vld [vmem:[%s841 + $0x98] sm:$0xff]
      %v856 = vld [vmem:[%s841 + $0xa8] sm:$0xff]
      %v857 = vld [vmem:[%s841 + $0xb0] sm:$0xff]
      %v858 = vld [vmem:[%s3 + $0x6] sm:$0x1]
      %v859 = vlaneseq
      %v860 = vshrl.u32 %v859, 7
      %v861 = vsub.s32 0, %v860
      %v862 = vrot.slane %v858, %v861
      %v863 = vmul.f32 %v842, %v862
      %v864 = vmul.f32 %v843, %v862
      %v865 = vmul.f32 %v844, %v862
      %v866 = vmul.f32 %v845, %v862
      %v867 = vmul.f32 %v846, %v862
      %v868 = vmul.f32 %v847, %v862
      %v869 = vmul.f32 %v848, %v862
      %v870 = vmul.f32 %v849, %v862
      %v871 = vmul.f32 %v850, %v862
      %v872 = vmul.f32 %v851, %v862
      %v873 = vmul.f32 %v852, %v862
      %v874 = vmul.f32 %v853, %v862
      %v875 = vmul.f32 %v854, %v862
      %v876 = vmul.f32 %v855, %v862
      %v877 = vmul.f32 %v856, %v862
      %v878 = vmul.f32 %v857, %v862
      %v879 = vadd.f32 %v825, %v863
      %v880 = vadd.f32 %v826, %v864
      %v881 = vadd.f32 %v827, %v865
      %v882 = vadd.f32 %v828, %v866
      %v883 = vadd.f32 %v829, %v867
      %v884 = vadd.f32 %v830, %v868
      %v885 = vadd.f32 %v831, %v869
      %v886 = vadd.f32 %v832, %v870
      %v887 = vadd.f32 %v833, %v871
      %v888 = vadd.f32 %v834, %v872
      %v889 = vadd.f32 %v835, %v873
      %v890 = vadd.f32 %v836, %v874
      %v891 = vadd.f32 %v837, %v875
      %v892 = vadd.f32 %v838, %v876
      %v893 = vadd.f32 %v839, %v877
      %v894 = vadd.f32 %v840, %v878
      %v895 = vld [vmem:[%s841 + $0x1] sm:$0xff]
      %v896 = vld [vmem:[%s841 + $0x9] sm:$0xff]
      %v897 = vld [vmem:[%s841 + $0x19] sm:$0xff]
      %v898 = vld [vmem:[%s841 + $0x21] sm:$0xff]
      %v899 = vld [vmem:[%s841 + $0x31] sm:$0xff]
      %v900 = vld [vmem:[%s841 + $0x39] sm:$0xff]
      %v901 = vld [vmem:[%s841 + $0x49] sm:$0xff]
      %v902 = vld [vmem:[%s841 + $0x51] sm:$0xff]
      %v903 = vld [vmem:[%s841 + $0x61] sm:$0xff]
      %v904 = vld [vmem:[%s841 + $0x69] sm:$0xff]
      %v905 = vld [vmem:[%s841 + $0x79] sm:$0xff]
      %v906 = vld [vmem:[%s841 + $0x81] sm:$0xff]
      %v907 = vld [vmem:[%s841 + $0x91] sm:$0xff]
      %v908 = vld [vmem:[%s841 + $0x99] sm:$0xff]
      %v909 = vld [vmem:[%s841 + $0xa9] sm:$0xff]
      %v910 = vld [vmem:[%s841 + $0xb1] sm:$0xff]
      %v911 = vld [vmem:[%s3 + $0x7] sm:$0x1]
      %v912 = vlaneseq
      %v913 = vshrl.u32 %v912, 7
      %v914 = vsub.s32 0, %v913
      %v915 = vrot.slane %v911, %v914
      %v916 = vmul.f32 %v895, %v915
      %v917 = vmul.f32 %v896, %v915
      %v918 = vmul.f32 %v897, %v915
      %v919 = vmul.f32 %v898, %v915
      %v920 = vmul.f32 %v899, %v915
      %v921 = vmul.f32 %v900, %v915
      %v922 = vmul.f32 %v901, %v915
      %v923 = vmul.f32 %v902, %v915
      %v924 = vmul.f32 %v903, %v915
      %v925 = vmul.f32 %v904, %v915
      %v926 = vmul.f32 %v905, %v915
      %v927 = vmul.f32 %v906, %v915
      %v928 = vmul.f32 %v907, %v915
      %v929 = vmul.f32 %v908, %v915
      %v930 = vmul.f32 %v909, %v915
      %v931 = vmul.f32 %v910, %v915
      %v932 = vadd.f32 %v879, %v916
      %v933 = vadd.f32 %v880, %v917
      %v934 = vadd.f32 %v881, %v918
      %v935 = vadd.f32 %v882, %v919
      %v936 = vadd.f32 %v883, %v920
      %v937 = vadd.f32 %v884, %v921
      %v938 = vadd.f32 %v885, %v922
      %v939 = vadd.f32 %v886, %v923
      %v940 = vadd.f32 %v887, %v924
      %v941 = vadd.f32 %v888, %v925
      %v942 = vadd.f32 %v889, %v926
      %v943 = vadd.f32 %v890, %v927
      %v944 = vadd.f32 %v891, %v928
      %v945 = vadd.f32 %v892, %v929
      %v946 = vadd.f32 %v893, %v930
      %v947 = vadd.f32 %v894, %v931
      %v948 = vld [vmem:[%s841 + $0x2] sm:$0xff]
      %v949 = vld [vmem:[%s841 + $0xa] sm:$0xff]
      %v950 = vld [vmem:[%s841 + $0x1a] sm:$0xff]
      %v951 = vld [vmem:[%s841 + $0x22] sm:$0xff]
      %v952 = vld [vmem:[%s841 + $0x32] sm:$0xff]
      %v953 = vld [vmem:[%s841 + $0x3a] sm:$0xff]
      %v954 = vld [vmem:[%s841 + $0x4a] sm:$0xff]
      %v955 = vld [vmem:[%s841 + $0x52] sm:$0xff]
      %v956 = vld [vmem:[%s841 + $0x62] sm:$0xff]
      %v957 = vld [vmem:[%s841 + $0x6a] sm:$0xff]
      %v958 = vld [vmem:[%s841 + $0x7a] sm:$0xff]
      %v959 = vld [vmem:[%s841 + $0x82] sm:$0xff]
      %v960 = vld [vmem:[%s841 + $0x92] sm:$0xff]
      %v961 = vld [vmem:[%s841 + $0x9a] sm:$0xff]
      %v962 = vld [vmem:[%s841 + $0xaa] sm:$0xff]
      %v963 = vld [vmem:[%s841 + $0xb2] sm:$0xff]
      %v964 = vld [vmem:[%s3 + $0x8] sm:$0x1]
      %v965 = vlaneseq
      %v966 = vshrl.u32 %v965, 7
      %v967 = vsub.s32 0, %v966
      %v968 = vrot.slane %v964, %v967
      %v969 = vmul.f32 %v948, %v968
      %v970 = vmul.f32 %v949, %v968
      %v971 = vmul.f32 %v950, %v968
      %v972 = vmul.f32 %v951, %v968
      %v973 = vmul.f32 %v952, %v968
      %v974 = vmul.f32 %v953, %v968
      %v975 = vmul.f32 %v954, %v968
      %v976 = vmul.f32 %v955, %v968
      %v977 = vmul.f32 %v956, %v968
      %v978 = vmul.f32 %v957, %v968
      %v979 = vmul.f32 %v958, %v968
      %v980 = vmul.f32 %v959, %v968
      %v981 = vmul.f32 %v960, %v968
      %v982 = vmul.f32 %v961, %v968
      %v983 = vmul.f32 %v962, %v968
      %v984 = vmul.f32 %v963, %v968
      %v985 = vadd.f32 %v932, %v969
      %v986 = vadd.f32 %v933, %v970
      %v987 = vadd.f32 %v934, %v971
      %v988 = vadd.f32 %v935, %v972
      %v989 = vadd.f32 %v936, %v973
      %v990 = vadd.f32 %v937, %v974
      %v991 = vadd.f32 %v938, %v975
      %v992 = vadd.f32 %v939, %v976
      %v993 = vadd.f32 %v940, %v977
      %v994 = vadd.f32 %v941, %v978
      %v995 = vadd.f32 %v942, %v979
      %v996 = vadd.f32 %v943, %v980
      %v997 = vadd.f32 %v944, %v981
      %v998 = vadd.f32 %v945, %v982
      %v999 = vadd.f32 %v946, %v983
      %v1000 = vadd.f32 %v947, %v984
      %v1001 = vld [vmem:[%s4] sm:$0x1]
      %v1003 = vlaneseq
      %v1004 = vshrl.u32 %v1003, 7
      %v1005 = vsub.s32 0, %v1004
      %v1006 = vrot.slane %v1001, %v1005
      %v1008 = vadd.f32 %v985, %v1006
      %v1009 = vadd.f32 %v986, %v1006
      %v1010 = vadd.f32 %v987, %v1006
      %v1011 = vadd.f32 %v988, %v1006
      %v1012 = vadd.f32 %v989, %v1006
      %v1013 = vadd.f32 %v990, %v1006
      %v1014 = vadd.f32 %v991, %v1006
      %v1015 = vadd.f32 %v992, %v1006
      %v1016 = vadd.f32 %v993, %v1006
      %v1017 = vadd.f32 %v994, %v1006
      %v1018 = vadd.f32 %v995, %v1006
      %v1019 = vadd.f32 %v996, %v1006
      %v1020 = vadd.f32 %v997, %v1006
      %v1021 = vadd.f32 %v998, %v1006
      %v1022 = vadd.f32 %v999, %v1006
      %v1023 = vadd.f32 %v1000, %v1006
      %v1024 = vld [vmem:[%s5] sm:$0x7]
      %v1025 = vld [vmem:[%s6] sm:$0x1]
      %v1027 = vlaneseq
      %v1028 = vshrl.u32 %v1027, 7
      %v1029 = vsub.s32 0, %v1028
      %v1030 = vrot.slane %v1025, %v1029
      %v1033 = vsel %vm463, %v1008, 0
      %v1036 = vsel %vm463, %v1009, 0
      %v1039 = vsel %vm463, %v1010, 0
      %v1042 = vsel %vm463, %v1011, 0
      %v1045 = vsel %vm463, %v1012, 0
      %v1048 = vsel %vm463, %v1013, 0
      %v1051 = vsel %vm463, %v1014, 0
      %v1054 = vsel %vm463, %v1015, 0
      %v1057 = vsel %vm463, %v1016, 0
      %v1060 = vsel %vm463, %v1017, 0
      %v1063 = vsel %vm463, %v1018, 0
      %v1066 = vsel %vm463, %v1019, 0
      %v1069 = vsel %vm463, %v1020, 0
      %v1072 = vsel %vm463, %v1021, 0
      %v1075 = vsel %vm463, %v1022, 0
      %v1078 = vsel %vm463, %v1023, 0
      %vm1080 = vcmask 1042432
      %v1082 = vsel %vm1080, %v1024, 0
      %1084 = vmatprep.subr.mxu0 0.0
      %1085 = vmatpush1.msra.mxu0 %v1082
      %1086 = vmatprep.subr.mxu0 0.0
      %1087 = vmatpush1.msra.mxu0 0.0
      %1088 = vmatprep.subr.mxu0 0.0
      %1089 = vmatpush1.msra.mxu0 0.0
      %1090 = vmatprep.subr.mxu0 0.0
      %1091 = vmatpush1.msra.mxu0 0.0
      %1092 = vmatprep.subr.mxu0 0.0
      %1093 = vmatpush1.msra.mxu0 0.0
      %1094 = vmatprep.subr.mxu0 0.0
      %1095 = vmatpush1.msra.mxu0 0.0
      %1096 = vmatprep.subr.mxu0 0.0
      %1097 = vmatpush1.msra.mxu0 0.0
      %1098 = vmatprep.subr.mxu0 0.0
      %1099 = vmatpush1.msra.mxu0 0.0
      %1100 = vmatprep.subr.mxu0 0.0
      %1101 = vmatpush1.msra.mxu0 0.0
      %1102 = vmatprep.subr.mxu0 0.0
      %1103 = vmatpush1.msra.mxu0 0.0
      %1104 = vmatprep.subr.mxu0 0.0
      %1105 = vmatpush1.msra.mxu0 0.0
      %1106 = vmatprep.subr.mxu0 0.0
      %1107 = vmatpush1.msra.mxu0 0.0
      %1108 = vmatprep.subr.mxu0 0.0
      %1109 = vmatpush1.msra.mxu0 0.0
      %1110 = vmatprep.subr.mxu0 0.0
      %1111 = vmatpush1.msra.mxu0 0.0
      %1112 = vmatprep.subr.mxu0 0.0
      %1113 = vmatpush1.msra.mxu0 0.0
      %1114 = vmatprep.subr.mxu0 0.0
      %1115 = vmatpush1.msra.mxu0 0.0
      %1116 = vmatprep.subr.mxu0 0.0
      %1117 = vmatpush1.msra.mxu0 0.0
      %1118 = vmatprep.subr.mxu0 0.0
      %1119 = vmatpush1.msra.mxu0 0.0
      %1120 = vmatprep.subr.mxu0 0.0
      %1121 = vmatpush1.msra.mxu0 0.0
      %1122 = vmatprep.subr.mxu0 0.0
      %1123 = vmatpush1.msra.mxu0 0.0
      %1124 = vmatprep.subr.mxu0 0.0
      %1125 = vmatpush1.msra.mxu0 0.0
      %1126 = vmatprep.subr.mxu0 0.0
      %1127 = vmatpush1.msra.mxu0 0.0
      %1128 = vmatprep.subr.mxu0 0.0
      %1129 = vmatpush1.msra.mxu0 0.0
      %1130 = vmatprep.subr.mxu0 0.0
      %1131 = vmatpush1.msra.mxu0 0.0
      %1132 = vmatprep.subr.mxu0 0.0
      %1133 = vmatpush1.msra.mxu0 0.0
      %1134 = vmatprep.subr.mxu0 0.0
      %1135 = vmatpush1.msra.mxu0 0.0
      %1136 = vmatprep.subr.mxu0 0.0
      %1137 = vmatpush1.msra.mxu0 0.0
      %1138 = vmatprep.subr.mxu0 0.0
      %1139 = vmatpush1.msra.mxu0 0.0
      %1140 = vmatprep.subr.mxu0 0.0
      %1141 = vmatpush1.msra.mxu0 0.0
      %1142 = vmatprep.subr.mxu0 0.0
      %1143 = vmatpush1.msra.mxu0 0.0
      %1144 = vmatprep.subr.mxu0 0.0
      %1145 = vmatpush1.msra.mxu0 0.0
      %1146 = vmatprep.subr.mxu0 0.0
      %1147 = vmatpush1.msra.mxu0 0.0
      %1148 = vmatprep.mubr.f32.mxu0 0.0
      %1149 = vmatmul.mubr.f32.gmra.mrb[0].mxu0 %v1033
      %v1150 = vpop.f32.mrb[0].mxu0
      %v1151 = vadd.f32 %v1030, %v1150
      %v1152 = vpop.f32.mrb[0].mxu0
      %1153 = vmatprep.mubr.f32.mxu0 0.0
      %1154 = vmatmul.mubr.f32.gmra.mrb[0].mxu0 %v1036
      %v1155 = vpop.f32.mrb[0].mxu0
      %v1156 = vadd.f32 %v1030, %v1155
      %v1157 = vpop.f32.mrb[0].mxu0
      %1158 = vmatprep.mubr.f32.mxu0 0.0
      %1159 = vmatmul.mubr.f32.gmra.mrb[0].mxu0 %v1039
      %v1160 = vpop.f32.mrb[0].mxu0
      %v1161 = vadd.f32 %v1030, %v1160
      %v1162 = vpop.f32.mrb[0].mxu0
      %1163 = vmatprep.mubr.f32.mxu0 0.0
      %1164 = vmatmul.mubr.f32.gmra.mrb[0].mxu0 %v1042
      %v1165 = vpop.f32.mrb[0].mxu0
      %v1166 = vadd.f32 %v1030, %v1165
      %v1167 = vpop.f32.mrb[0].mxu0
      %1168 = vmatprep.mubr.f32.mxu0 0.0
      %1169 = vmatmul.mubr.f32.gmra.mrb[0].mxu0 %v1045
      %v1170 = vpop.f32.mrb[0].mxu0
      %v1171 = vadd.f32 %v1030, %v1170
      %v1172 = vpop.f32.mrb[0].mxu0
      %1173 = vmatprep.mubr.f32.mxu0 0.0
      %1174 = vmatmul.mubr.f32.gmra.mrb[0].mxu0 %v1048
      %v1175 = vpop.f32.mrb[0].mxu0
      %v1176 = vadd.f32 %v1030, %v1175
      %v1177 = vpop.f32.mrb[0].mxu0
      %1178 = vmatprep.mubr.f32.mxu0 0.0
      %1179 = vmatmul.mubr.f32.gmra.mrb[0].mxu0 %v1051
      %v1180 = vpop.f32.mrb[0].mxu0
      %v1181 = vadd.f32 %v1030, %v1180
      %v1182 = vpop.f32.mrb[0].mxu0
      %1183 = vmatprep.mubr.f32.mxu0 0.0
      %1184 = vmatmul.mubr.f32.gmra.mrb[0].mxu0 %v1054
      %v1185 = vpop.f32.mrb[0].mxu0
      %v1186 = vadd.f32 %v1030, %v1185
      %v1187 = vpop.f32.mrb[0].mxu0
      %1188 = vmatprep.mubr.f32.mxu0 0.0
      %1189 = vmatmul.mubr.f32.gmra.mrb[0].mxu0 %v1057
      %v1190 = vpop.f32.mrb[0].mxu0
      %v1191 = vadd.f32 %v1030, %v1190
      %v1192 = vpop.f32.mrb[0].mxu0
      %1193 = vmatprep.mubr.f32.mxu0 0.0
      %1194 = vmatmul.mubr.f32.gmra.mrb[0].mxu0 %v1060
      %v1195 = vpop.f32.mrb[0].mxu0
      %v1196 = vadd.f32 %v1030, %v1195
      %v1197 = vpop.f32.mrb[0].mxu0
      %1198 = vmatprep.mubr.f32.mxu0 0.0
      %1199 = vmatmul.mubr.f32.gmra.mrb[0].mxu0 %v1063
      %v1200 = vpop.f32.mrb[0].mxu0
      %v1201 = vadd.f32 %v1030, %v1200
      %v1202 = vpop.f32.mrb[0].mxu0
      %1203 = vmatprep.mubr.f32.mxu0 0.0
      %1204 = vmatmul.mubr.f32.gmra.mrb[0].mxu0 %v1066
      %v1205 = vpop.f32.mrb[0].mxu0
      %v1206 = vadd.f32 %v1030, %v1205
      %v1207 = vpop.f32.mrb[0].mxu0
      %1208 = vmatprep.mubr.f32.mxu0 0.0
      %1209 = vmatmul.mubr.f32.gmra.mrb[0].mxu0 %v1069
      %v1210 = vpop.f32.mrb[0].mxu0
      %v1211 = vadd.f32 %v1030, %v1210
      %v1212 = vpop.f32.mrb[0].mxu0
      %1213 = vmatprep.mubr.f32.mxu0 0.0
      %1214 = vmatmul.mubr.f32.gmra.mrb[0].mxu0 %v1072
      %v1215 = vpop.f32.mrb[0].mxu0
      %v1216 = vadd.f32 %v1030, %v1215
      %v1217 = vpop.f32.mrb[0].mxu0
      %1218 = vmatprep.mubr.f32.mxu0 0.0
      %1219 = vmatmul.mubr.f32.gmra.mrb[0].mxu0 %v1075
      %v1220 = vpop.f32.mrb[0].mxu0
      %v1221 = vadd.f32 %v1030, %v1220
      %v1222 = vpop.f32.mrb[0].mxu0
      %1223 = vmatprep.mubr.f32.mxu0 0.0
      %1224 = vmatmul.mubr.f32.gmra.mrb[0].mxu0 %v1078
      %v1225 = vpop.f32.mrb[0].mxu0
      %v1226 = vadd.f32 %v1030, %v1225
      %v1227 = vpop.f32.mrb[0].mxu0
      %1228 = vdwg.mxu0
      %vm1229 = vcmask 64512
      %1230 = vst.msk [vmem:[%s445] sm:$0xff] %vm1229, %v1151
      %1231 = vst.msk [vmem:[%s445 + $0x8] sm:$0xff] %vm1229, %v1156
      %1232 = vst.msk [vmem:[%s445 + $0x10] sm:$0xff] %vm1229, %v1161
      %1233 = vst.msk [vmem:[%s445 + $0x18] sm:$0xff] %vm1229, %v1166
      %1234 = vst.msk [vmem:[%s445 + $0x20] sm:$0xff] %vm1229, %v1171
      %1235 = vst.msk [vmem:[%s445 + $0x28] sm:$0xff] %vm1229, %v1176
      %1236 = vst.msk [vmem:[%s445 + $0x30] sm:$0xff] %vm1229, %v1181
      %1237 = vst.msk [vmem:[%s445 + $0x38] sm:$0xff] %vm1229, %v1186
      %1238 = vst.msk [vmem:[%s445 + $0x40] sm:$0xff] %vm1229, %v1191
      %1239 = vst.msk [vmem:[%s445 + $0x48] sm:$0xff] %vm1229, %v1196
      %1240 = vst.msk [vmem:[%s445 + $0x50] sm:$0xff] %vm1229, %v1201
      %1241 = vst.msk [vmem:[%s445 + $0x58] sm:$0xff] %vm1229, %v1206
      %1242 = vst.msk [vmem:[%s445 + $0x60] sm:$0xff] %vm1229, %v1211
      %1243 = vst.msk [vmem:[%s445 + $0x68] sm:$0xff] %vm1229, %v1216
      %1244 = vst.msk [vmem:[%s445 + $0x70] sm:$0xff] %vm1229, %v1221
      %1245 = vst.msk [vmem:[%s445 + $0x78] sm:$0xff] %vm1229, %v1226
      %s1246 = smul.u32 8, %s23
      %p1247 = scmp.lt.s32.totalorder %s22, 1
      %s1248 = scalar_select %p1247, %s22, 1
      %p1249 = scmp.lt.s32.totalorder %s1246, 15
      %s1250 = scalar_select %p1249, %s1246, 15
      %s1251 = smul.addr %s1250, 2
      %s1252 = smul.addr %s1248, 32
      %s1253 = sadd.s32 %s1251, %s1252
      %s1254 = smul.addr %s1253, 8
      %s1255 = scalar_lea.vmem %s7, %s1254
      // Predicated region
      $region49: #{tpu_custom_call.1} parent=47 // pred_check
        %p1256 = pneg %p234
      $region50: #{tpu_custom_call.1} parent=47 // pred_check_branch
        %1258 = sbr.rel (%p1256) target = $region52
      $region51: #{tpu_custom_call.1} parent=47 // pred_region
        %s1259 = smul.u32 8, %s23
      $region52: #{tpu_custom_call.1} parent=47 // pred_fallthru
        _
    $region48: #{tpu_custom_call.1} parent=5 // pred_fallthru
      _
    %p1260 = scmp.le.s32.totalorder 2, %s13
    // Predicated region
    $region53: #{tpu_custom_call.1} parent=5 // pred_check
      %p1261 = pneg %p1260
    $region54: #{tpu_custom_call.1} parent=5 // pred_check_branch
      %1263 = sbr.rel (%p1261) target = $region56
    $region55: #{tpu_custom_call.1} parent=5 // pred_region
      %s1264 = ssub.s32 %s13, 2
      // Predicated region
      $region57: #{tpu_custom_call.1} parent=55 // pred_check
        %p1265 = pneg %p240
      $region58: #{tpu_custom_call.1} parent=55 // pred_check_branch
        %1267 = sbr.rel (%p1265) target = $region60
      $region59: #{tpu_custom_call.1} parent=55 // pred_region
        %s1268 = smul.u32 8, %s25
        %p1269 = scmp.lt.s32.totalorder %s24, 1
        %s1270 = scalar_select %p1269, %s24, 1
        %p1271 = scmp.lt.s32.totalorder %s1268, 15
        %s1272 = scalar_select %p1271, %s1268, 15
        %s1273 = smul.addr %s1272, 2
        %s1274 = smul.addr %s1270, 32
        %s1275 = sadd.s32 %s1273, %s1274
        %s1276 = smul.addr %s1275, 8
        %s1277 = scalar_lea.vmem %s7, %s1276
      $region60: #{tpu_custom_call.1} parent=55 // pred_fallthru
        _
    $region56: #{tpu_custom_call.1} parent=5 // pred_fallthru
      _
  $region6: #{tpu_custom_call.1} parent=0 // loop_footer
    %s17 = sadd.s32 1, %s13
  $region7: #{tpu_custom_call.1} parent=0 // loop_footer_branch
    %12 = sbr.rel target = $region3
  $region8: #{tpu_custom_call.1} parent=0 // loop_exit
    _

</llo_original>
